<compile_context>
chip_gen: v5e
topology: v5e:2x2
jax: 0.10.0
libtpu: 0.0.40
codegen_flags: <defaults>
</compile_context>

<pallas_src>
import functools

import jax
import jax.numpy as jnp
from jax import lax
from jax.experimental import pallas as pl
from jax.experimental.pallas import tpu as pltpu

C_IN = 512    # fixed by nn.Conv2d(in_channels=512, ...)
C_OUT = 256   # fixed by nn.Conv2d(..., out_channels=256)


def _query_vmem_capacity():
    try:
        return int(pltpu.get_tpu_info().vmem_capacity_bytes)
    except Exception:
        return 64 * 1024 * 1024   # conservative fallback (v7x per-TC VMEM)


_VMEM_CAPACITY = _query_vmem_capacity()


def _knn_graph_kernel(xk_ref, xq_ref, w_ref, shift_ref, rel_ref,
                      sim_ref, idx_ref, *, k_total):
    bb, nk, _ = xk_ref.shape
    _, tq, _ = xq_ref.shape

    w = w_ref[...]                                            # bf16 (C_IN, C_OUT)
    shift = shift_ref[...]                                    # f32  (1, C_OUT)

    # ---- projection (bf16 MXU, f32 accumulation). Conv bias + BN affine are
    #      pre-folded into (w, shift).  Key features cover all N points; query
    #      features only this row tile (recomputed per tile to keep both grid
    #      axes parallel).
    kf = jnp.dot(xk_ref[...].reshape(bb * nk, C_IN), w,
                 preferred_element_type=jnp.float32) + shift
    kf = kf.reshape(bb, nk, C_OUT)                            # f32
    qf = jnp.dot(xq_ref[...].reshape(bb * tq, C_IN), w,
                 preferred_element_type=jnp.float32) + shift
    qf = qf.reshape(bb, tq, C_OUT)                            # f32

    # ---- Gram matrix (bf16 in / f32 acc): dist0[b, q, k] = qf[b, q] . kf[b, k]
    kb = kf.astype(jnp.bfloat16)
    qb = qf.astype(jnp.bfloat16)
    dist0 = jnp.einsum("bqc,bkc->bqk", qb, kb,
                       preferred_element_type=jnp.float32)    # (bb, tq, nk)

    # ---- sim_map_0 = softmax(dist0, dim=-1); exact reciprocal (one per row).
    m0 = jnp.max(dist0, axis=-1, keepdims=True)
    e0 = jnp.exp(dist0 - m0)
    denom = jnp.sum(e0, axis=-1, keepdims=True)
    sim_ref[...] = e0 * pl.reciprocal(denom)

    # ---- cosine similarity with direct f32 norms (no masked-diag extraction,
    #      no second Gram matmul).  F.normalize clamp: max(||f||, 1e-12).
    sq_q = jnp.sum(qf * qf, axis=-1, keepdims=True)           # (bb, tq, 1)
    sq_k = jnp.sum(kf * kf, axis=-1).reshape(bb, 1, nk)       # (bb, 1, nk)
    inv_q = lax.rsqrt(jnp.maximum(sq_q, 1e-24))
    inv_k = lax.rsqrt(jnp.maximum(sq_k, 1e-24))
    dist = dist0 * inv_q * inv_k + rel_ref[...].astype(jnp.float32)

    # ---- top-k with ONE reduction per step: value and reversed column index
    #      packed into a single order-preserving int32 key (low ceil(log2 N)
    #      mantissa bits truncated -> only affects near-exact ties, below the
    #      already-accepted bf16 Gram rounding).
    col_iota = lax.broadcasted_iota(jnp.int32, (bb, tq, nk), 2)
    b_bits = max(1, (nk - 1).bit_length())
    idx_mask = (1 << b_bits) - 1
    bits = pltpu.bitcast(dist, jnp.int32)
    bits = bits ^ ((bits >> 31) & jnp.int32(0x7FFFFFFF))      # float order -> int order
    packed = (bits & jnp.int32(~idx_mask)) | (jnp.int32(nk - 1) - col_iota)

    int_min = jnp.int32(jnp.iinfo(jnp.int32).min)
    cols = []
    for step in range(k_total):
        pm = jnp.max(packed, axis=-1, keepdims=True)          # (bb, tq, 1)
        cols.append(jnp.int32(nk - 1) - (pm & jnp.int32(idx_mask)))
        if step + 1 < k_total:
            packed = jnp.where(packed == pm, int_min, packed)
    idx_ref[...] = jnp.concatenate(cols, axis=-1)             # (bb, tq, k_total)


def _estimate_vmem_bytes(bb, tq, n, k_total):
    """Per-grid-step VMEM: double-buffered pipeline blocks + live temporaries."""
    row_block = bb * tq * n
    blocks = 2 * (bb * n * C_IN * 2        # key x-block, bf16
                  + bb * tq * C_IN * 2     # query x-block, bf16
                  + row_block * 2          # relative_pos block, bf16
                  + row_block * 4          # sim_map output block, f32
                  + bb * tq * k_total * 4  # idx output block, int32
                  + C_IN * C_OUT * 2 + C_OUT * 4)
    feats = bb * (n + tq) * C_OUT * (4 + 2)      # f32 + bf16 projected features
    temps = 10 * row_block * 4                   # live (bb,tq,n) temporaries
    return blocks + feats + temps


def _select_tiles(batch, n, k_total, vmem_budget):
    """Pick (bb, tq): largest row tile tq (divisor of n, multiple of 8) that
    fits the VMEM budget, then the largest batch block bb that still fits and
    keeps >= 2 total grid steps (so both v7x TensorCores get work)."""
    tq_cands = sorted({d for d in range(8, n + 1, 8) if n % d == 0} | {n},
                      reverse=True)
    tq = tq_cands[-1]
    for cand in tq_cands:
        if _estimate_vmem_bytes(1, cand, n, k_total) <= vmem_budget:
            tq = cand
            break
    # B == 1 with a single full-N step would leave one v7x TensorCore idle:
    # split the query rows once.
    if batch == 1 and tq == n and n % 16 == 0 and n // 2 >= 8:
        tq = n // 2

    n_row_tiles = n // tq
    min_steps = 2 if batch * n_row_tiles >= 2 else 1
    bb = 1
    # bb > 1 only when the (bb*rows, C) reshapes stay bf16 sublane-tile aligned.
    if n % 16 == 0 and (tq % 16 == 0 or tq == n):
        for cand in range(2, batch + 1):
            if batch % cand:
                continue
            if (batch // cand) * n_row_tiles < min_steps:
                break
            if _estimate_vmem_bytes(cand, tq, n, k_total) > vmem_budget:
                break
            bb = cand
    return bb, tq


@functools.partial(jax.jit, static_argnames=("k", "dilation"))
def dense_dilated_knn_graph(x, relative_pos, params, *, k=9, dilation=1):
    """x: (B, 512, N, 1) f32; relative_pos: (B, N, N).
    Returns (edge_index (2, B, N, k) int32, sim_map_0 (B, N, N) f32)."""
    w, bias, scale, shift = params
    B, C, N, _ = x.shape
    assert C == C_IN
    k_total = k * dilation
    if k_total > N:
        raise ValueError(f"k*dilation={k_total} exceeds number of points N={N}")

    # Fold Conv2d bias + eval-mode BatchNorm2d affine into the projection:
    #   (x @ w + b) * scale + shift  ==  x @ (w * scale) + (b * scale + shift)
    w_folded = (w * scale).astype(jnp.bfloat16)               # (C_IN, C_OUT)
    shift_folded = bias * scale + shift                       # (1, C_OUT) f32

    # Channels-last, bf16 activations for the MXU; bf16 relative_pos stream.
    x_bnc = jnp.transpose(x[..., 0], (0, 2, 1)).astype(jnp.bfloat16)  # (B, N, C_IN)
    rel_bf16 = relative_pos.astype(jnp.bfloat16)

    cap = _VMEM_CAPACITY
    bb, tq = _select_tiles(B, N, k_total, vmem_budget=int(0.45 * cap))
    grid = (B // bb, N // tq)

    # Always set the scoped limit (v5e default is only 16 MiB) and clamp it to
    # the chip's physical VMEM (v7x: 64 MiB per TensorCore).
    est = _estimate_vmem_bytes(bb, tq, N, k_total)
    vmem_limit = int(min(max(est + (8 << 20), 32 << 20), 0.85 * cap))

    kernel = functools.partial(_knn_graph_kernel, k_total=k_total)
    sim_map, nn_idx = pl.pallas_call(
        kernel,
        out_shape=(jax.ShapeDtypeStruct((B, N, N), jnp.float32),
                   jax.ShapeDtypeStruct((B, N, k_total), jnp.int32)),
        grid_spec=pltpu.PrefetchScalarGridSpec(
            num_scalar_prefetch=0,
            grid=grid,
            in_specs=[
                pl.BlockSpec((bb, N, C_IN), lambda i, j: (i, 0, 0)),   # keys (all points)
                pl.BlockSpec((bb, tq, C_IN), lambda i, j: (i, j, 0)),  # query row tile
                pl.BlockSpec((C_IN, C_OUT), lambda i, j: (0, 0)),
                pl.BlockSpec((1, C_OUT), lambda i, j: (0, 0)),
                pl.BlockSpec((bb, tq, N), lambda i, j: (i, j, 0)),     # relative_pos
            ],
            out_specs=[
                pl.BlockSpec((bb, tq, N), lambda i, j: (i, j, 0)),     # sim_map_0
                pl.BlockSpec((bb, tq, k_total), lambda i, j: (i, j, 0)),
            ],
        ),
        compiler_params=pltpu.CompilerParams(
            dimension_semantics=("parallel", "parallel"),
            vmem_limit_bytes=vmem_limit),
    )(x_bnc, x_bnc, w_folded, shift_folded, rel_bf16)

    # center_idx = arange(N).repeat(B, k_total, 1).transpose(2, 1)
    center_idx = jnp.broadcast_to(
        jnp.arange(N, dtype=nn_idx.dtype)[None, :, None], (B, N, k_total))
    edge_index = jnp.stack((nn_idx, center_idx), axis=0)      # (2, B, N, k_total)
    # DenseDilated (non-stochastic / eval path): every `dilation`-th neighbour.
    edge_index = edge_index[..., ::dilation]                  # (2, B, N, k)
    return edge_index, sim_map


def init_params(key):
    """Deterministic synthetic parameters matching the module's layer shapes."""
    k1, k2, k3 = jax.random.split(key, 3)
    # Conv2d(512, 256, 1): weight (256, 512, 1, 1) ~ N(0, 0.02); bias present.
    w_torch = 0.02 * jax.random.normal(k1, (C_OUT, C_IN), jnp.float32)
    w = jnp.transpose(w_torch)                                # (C_IN, C_OUT)
    bias = 0.01 * jax.random.normal(k2, (C_OUT,), jnp.float32)
    # BatchNorm2d(256), eval mode: running_mean=0, running_var=1, eps=1e-5.
    gamma = 1.0 + 0.02 * jax.random.normal(k3, (C_OUT,), jnp.float32)
    beta = jnp.zeros((C_OUT,), jnp.float32)
    running_mean = jnp.zeros((C_OUT,), jnp.float32)
    running_var = jnp.ones((C_OUT,), jnp.float32)
    scale = gamma / jnp.sqrt(running_var + 1e-5)
    shift = beta - running_mean * scale
    return (w,
            bias.reshape(1, C_OUT),
            scale.reshape(1, C_OUT),
            shift.reshape(1, C_OUT))


if __name__ == "__main__":
    B, N = 4, 16          # N must be a perfect square in the reference (hhh = sqrt(N))
    k, dilation = 9, 1

    root = jax.random.PRNGKey(0)
    kp, kx, kr = jax.random.split(root, 3)
    params = init_params(kp)
    x = jax.random.normal(kx, (B, C_IN, N, 1), jnp.float32)
    relative_pos = 0.1 * jax.random.normal(kr, (B, N, N), jnp.float32)

    edge_index, sim_map = dense_dilated_knn_graph(
        x, relative_pos, params, k=k, dilation=dilation)
    jax.block_until_ready((edge_index, sim_map))

    assert edge_index.shape == (2, B, N, k)
    assert sim_map.shape == (B, N, N) and sim_map.dtype == jnp.float32
    assert bool(jnp.all((edge_index >= 0) & (edge_index < N)))
    # softmax rows sum to 1 (exact reciprocal => tight tolerance)
    assert bool(jnp.allclose(jnp.sum(sim_map, axis=-1), 1.0, atol=1e-4))
    # the center column of edge_index is arange(N) broadcast over batch and k
    assert bool(jnp.all(
        edge_index[1] == jnp.arange(N, dtype=jnp.int32)[None, :, None]))

    # f32 reference for sim_map_0 (projection + Gram + softmax); loose tol for
    # the kernel's bf16 MXU operands.
    w_p, bias_p, scale_p, shift_p = params
    feat_ref = (jnp.einsum("bnc,cd->bnd",
                           jnp.transpose(x[..., 0], (0, 2, 1)), w_p * scale_p)
                + (bias_p * scale_p + shift_p))
    logits_ref = jnp.einsum("bqc,bkc->bqk", feat_ref, feat_ref)
    sim_expected = jax.nn.softmax(logits_ref, axis=-1)
    assert bool(jnp.allclose(sim_map, sim_expected, atol=2e-2))

    print("KERNEL_OK")
</pallas_src>

<mosaic_0001>
module attributes {stable_mosaic.version = 11 : i64} {
  func.func @_knn_graph_kernel(%arg0: i32, %arg1: i32, %arg2: memref<2x16x512xbf16, #tpu.memory_space<vmem>>, %arg3: memref<2x16x512xbf16, #tpu.memory_space<vmem>>, %arg4: memref<512x256xbf16, #tpu.memory_space<vmem>>, %arg5: memref<1x256xf32, #tpu.memory_space<vmem>>, %arg6: memref<2x16x16xbf16, #tpu.memory_space<vmem>>, %arg7: memref<2x16x16xf32, #tpu.memory_space<vmem>>, %arg8: memref<2x16x9xi32, #tpu.memory_space<vmem>>) attributes {dimension_semantics = [#tpu.dimension_semantics<parallel>, #tpu.dimension_semantics<parallel>], iteration_bounds = array<i64: 2, 1>, scalar_prefetch = 0 : i64, scratch_operands = 0 : i64, tpu.core_type = #tpu.core_type<tc>, window_params = [{transform_indices = @transform_0, window_bounds = array<i64: 2, 16, 512>}, {transform_indices = @transform_1, window_bounds = array<i64: 2, 16, 512>}, {pipeline_mode = #tpu.pipeline_mode<synchronous>, transform_indices = @transform_2, window_bounds = array<i64: 512, 256>}, {pipeline_mode = #tpu.pipeline_mode<synchronous>, transform_indices = @transform_3, window_bounds = array<i64: 1, 256>}, {transform_indices = @transform_4, window_bounds = array<i64: 2, 16, 16>}, {transform_indices = @transform_5, window_bounds = array<i64: 2, 16, 16>}, {transform_indices = @transform_6, window_bounds = array<i64: 2, 16, 9>}]} {
    %c0 = arith.constant 0 : index
    %c0_0 = arith.constant 0 : index
    %0 = vector.load %arg4[%c0, %c0_0] : memref<512x256xbf16, #tpu.memory_space<vmem>>, vector<512x256xbf16>
    %c0_1 = arith.constant 0 : index
    %c0_2 = arith.constant 0 : index
    %1 = vector.load %arg5[%c0_1, %c0_2] : memref<1x256xf32, #tpu.memory_space<vmem>>, vector<1x256xf32>
    %c0_3 = arith.constant 0 : index
    %c0_4 = arith.constant 0 : index
    %c0_5 = arith.constant 0 : index
    %2 = vector.load %arg2[%c0_3, %c0_4, %c0_5] : memref<2x16x512xbf16, #tpu.memory_space<vmem>>, vector<2x16x512xbf16>
    %3 = vector.shape_cast %2 : vector<2x16x512xbf16> to vector<32x512xbf16>
    %cst = arith.constant dense<0.000000e+00> : vector<32x256xf32>
    %4 = tpu.matmul %3, %0, %cst {dimension_numbers = #tpu.dot_dimension_numbers<[1], [0], [0], [1], [0, 0, 1, 1], [], []>} : vector<32x512xbf16>, vector<512x256xbf16>, vector<32x256xf32> -> vector<32x256xf32>
    %5 = vector.broadcast %1 : vector<1x256xf32> to vector<32x256xf32>
    %6 = arith.addf %4, %5 : vector<32x256xf32>
    %7 = vector.shape_cast %6 : vector<32x256xf32> to vector<2x16x256xf32>
    %c0_6 = arith.constant 0 : index
    %c0_7 = arith.constant 0 : index
    %c0_8 = arith.constant 0 : index
    %8 = vector.load %arg3[%c0_6, %c0_7, %c0_8] : memref<2x16x512xbf16, #tpu.memory_space<vmem>>, vector<2x16x512xbf16>
    %9 = vector.shape_cast %8 : vector<2x16x512xbf16> to vector<32x512xbf16>
    %cst_9 = arith.constant dense<0.000000e+00> : vector<32x256xf32>
    %10 = tpu.matmul %9, %0, %cst_9 {dimension_numbers = #tpu.dot_dimension_numbers<[1], [0], [0], [1], [0, 0, 1, 1], [], []>} : vector<32x512xbf16>, vector<512x256xbf16>, vector<32x256xf32> -> vector<32x256xf32>
    %11 = vector.broadcast %1 : vector<1x256xf32> to vector<32x256xf32>
    %12 = arith.addf %10, %11 : vector<32x256xf32>
    %13 = vector.shape_cast %12 : vector<32x256xf32> to vector<2x16x256xf32>
    %14 = arith.truncf %7 : vector<2x16x256xf32> to vector<2x16x256xbf16>
    %15 = arith.truncf %13 : vector<2x16x256xf32> to vector<2x16x256xbf16>
    "tpu.trace_start"() <{level = 10 : i32, message = "bqc,bkc->bqk"}> : () -> ()
    %cst_10 = arith.constant dense<0.000000e+00> : vector<2x16x16xf32>
    %16 = tpu.matmul %15, %14, %cst_10 {dimension_numbers = #tpu.dot_dimension_numbers<[2], [2], [1], [1], [0, 0, 0, 1, 1, 1], [0], [0]>} : vector<2x16x256xbf16>, vector<2x16x256xbf16>, vector<2x16x16xf32> -> vector<2x16x16xf32>
    "tpu.trace_stop"() : () -> ()
    %cst_11 = arith.constant dense<0xFF800000> : vector<2x16xf32>
    %17 = vector.multi_reduction <maximumf>, %16, %cst_11 [2] : vector<2x16x16xf32> to vector<2x16xf32>
    %18 = vector.shape_cast %17 : vector<2x16xf32> to vector<2x16x1xf32>
    %19 = vector.broadcast %18 : vector<2x16x1xf32> to vector<2x16x16xf32>
    %20 = arith.subf %16, %19 : vector<2x16x16xf32>
    %21 = math.exp %20 : vector<2x16x16xf32>
    %cst_12 = arith.constant dense<0.000000e+00> : vector<2x16xf32>
    %22 = vector.multi_reduction <add>, %21, %cst_12 [2] : vector<2x16x16xf32> to vector<2x16xf32>
    %23 = vector.shape_cast %22 : vector<2x16xf32> to vector<2x16x1xf32>
    %24 = tpu.reciprocal %23 : vector<2x16x1xf32> -> vector<2x16x1xf32>
    %25 = vector.broadcast %24 : vector<2x16x1xf32> to vector<2x16x16xf32>
    %26 = arith.mulf %21, %25 : vector<2x16x16xf32>
    %c0_13 = arith.constant 0 : index
    %c0_14 = arith.constant 0 : index
    %c0_15 = arith.constant 0 : index
    %27 = vector.load %arg7[%c0_13, %c0_14, %c0_15] : memref<2x16x16xf32, #tpu.memory_space<vmem>>, vector<2x16x16xf32>
    tpu.vector_store %arg7[%c0_13, %c0_14, %c0_15], %26 {strides = array<i32>} : memref<2x16x16xf32, #tpu.memory_space<vmem>>, vector<2x16x16xf32>,
    %28 = arith.mulf %13, %13 : vector<2x16x256xf32>
    %cst_16 = arith.constant dense<0.000000e+00> : vector<2x16xf32>
    %29 = vector.multi_reduction <add>, %28, %cst_16 [2] : vector<2x16x256xf32> to vector<2x16xf32>
    %30 = vector.shape_cast %29 : vector<2x16xf32> to vector<2x16x1xf32>
    %31 = arith.mulf %7, %7 : vector<2x16x256xf32>
    %cst_17 = arith.constant dense<0.000000e+00> : vector<2x16xf32>
    %32 = vector.multi_reduction <add>, %31, %cst_17 [2] : vector<2x16x256xf32> to vector<2x16xf32>
    %33 = vector.shape_cast %32 : vector<2x16xf32> to vector<2x1x16xf32>
    %cst_18 = arith.constant 1.000000e-24 : f32
    %34 = vector.broadcast %cst_18 : f32 to vector<2x16x1xf32>
    %35 = arith.maximumf %30, %34 : vector<2x16x1xf32>
    %36 = math.rsqrt %35 : vector<2x16x1xf32>
    %cst_19 = arith.constant 1.000000e-24 : f32
    %37 = vector.broadcast %cst_19 : f32 to vector<2x1x16xf32>
    %38 = arith.maximumf %33, %37 : vector<2x1x16xf32>
    %39 = math.rsqrt %38 : vector<2x1x16xf32>
    %40 = vector.broadcast %36 : vector<2x16x1xf32> to vector<2x16x16xf32>
    %41 = arith.mulf %16, %40 : vector<2x16x16xf32>
    %42 = vector.broadcast %39 : vector<2x1x16xf32> to vector<2x16x16xf32>
    %43 = arith.mulf %41, %42 : vector<2x16x16xf32>
    %c0_20 = arith.constant 0 : index
    %c0_21 = arith.constant 0 : index
    %c0_22 = arith.constant 0 : index
    %44 = vector.load %arg6[%c0_20, %c0_21, %c0_22] : memref<2x16x16xbf16, #tpu.memory_space<vmem>>, vector<2x16x16xbf16>
    %45 = arith.extf %44 : vector<2x16x16xbf16> to vector<2x16x16xf32>
    %46 = arith.addf %43, %45 : vector<2x16x16xf32>
    %47 = tpu.iota {dimensions = array<i32: 2>} : vector<2x16x16xi32>
    %48 = tpu.bitcast %46 : vector<2x16x16xf32> -> vector<2x16x16xi32>
    %c31_i32 = arith.constant 31 : i32
    %49 = vector.broadcast %c31_i32 : i32 to vector<2x16x16xi32>
    %50 = arith.shrsi %48, %49 : vector<2x16x16xi32>
    %c2147483647_i32 = arith.constant 2147483647 : i32
    %51 = vector.broadcast %c2147483647_i32 : i32 to vector<2x16x16xi32>
    %52 = arith.andi %50, %51 : vector<2x16x16xi32>
    %53 = arith.xori %48, %52 : vector<2x16x16xi32>
    %c-16_i32 = arith.constant -16 : i32
    %54 = vector.broadcast %c-16_i32 : i32 to vector<2x16x16xi32>
    %55 = arith.andi %53, %54 : vector<2x16x16xi32>
    %c15_i32 = arith.constant 15 : i32
    %56 = vector.broadcast %c15_i32 : i32 to vector<2x16x16xi32>
    %57 = arith.subi %56, %47 : vector<2x16x16xi32>
    %58 = arith.ori %55, %57 : vector<2x16x16xi32>
    %cst_23 = arith.constant dense<-2147483648> : vector<2x16xi32>
    %59 = vector.multi_reduction <maxsi>, %58, %cst_23 [2] : vector<2x16x16xi32> to vector<2x16xi32>
    %60 = vector.shape_cast %59 : vector<2x16xi32> to vector<2x16x1xi32>
    %c15_i32_24 = arith.constant 15 : i32
    %61 = vector.broadcast %c15_i32_24 : i32 to vector<2x16x1xi32>
    %62 = arith.andi %60, %61 : vector<2x16x1xi32>
    %c15_i32_25 = arith.constant 15 : i32
    %63 = vector.broadcast %c15_i32_25 : i32 to vector<2x16x1xi32>
    %64 = arith.subi %63, %62 : vector<2x16x1xi32>
    %65 = vector.broadcast %60 : vector<2x16x1xi32> to vector<2x16x16xi32>
    %66 = arith.cmpi eq, %58, %65 : vector<2x16x16xi32>
    %c-2147483648_i32 = arith.constant -2147483648 : i32
    %67 = vector.broadcast %c-2147483648_i32 : i32 to vector<2x16x16xi32>
    %68 = arith.select %66, %67, %58 : vector<2x16x16xi1>, vector<2x16x16xi32>
    %cst_26 = arith.constant dense<-2147483648> : vector<2x16xi32>
    %69 = vector.multi_reduction <maxsi>, %68, %cst_26 [2] : vector<2x16x16xi32> to vector<2x16xi32>
    %70 = vector.shape_cast %69 : vector<2x16xi32> to vector<2x16x1xi32>
    %c15_i32_27 = arith.constant 15 : i32
    %71 = vector.broadcast %c15_i32_27 : i32 to vector<2x16x1xi32>
    %72 = arith.andi %70, %71 : vector<2x16x1xi32>
    %c15_i32_28 = arith.constant 15 : i32
    %73 = vector.broadcast %c15_i32_28 : i32 to vector<2x16x1xi32>
    %74 = arith.subi %73, %72 : vector<2x16x1xi32>
    %75 = vector.broadcast %70 : vector<2x16x1xi32> to vector<2x16x16xi32>
    %76 = arith.cmpi eq, %68, %75 : vector<2x16x16xi32>
    %c-2147483648_i32_29 = arith.constant -2147483648 : i32
    %77 = vector.broadcast %c-2147483648_i32_29 : i32 to vector<2x16x16xi32>
    %78 = arith.select %76, %77, %68 : vector<2x16x16xi1>, vector<2x16x16xi32>
    %cst_30 = arith.constant dense<-2147483648> : vector<2x16xi32>
    %79 = vector.multi_reduction <maxsi>, %78, %cst_30 [2] : vector<2x16x16xi32> to vector<2x16xi32>
    %80 = vector.shape_cast %79 : vector<2x16xi32> to vector<2x16x1xi32>
    %c15_i32_31 = arith.constant 15 : i32
    %81 = vector.broadcast %c15_i32_31 : i32 to vector<2x16x1xi32>
    %82 = arith.andi %80, %81 : vector<2x16x1xi32>
    %c15_i32_32 = arith.constant 15 : i32
    %83 = vector.broadcast %c15_i32_32 : i32 to vector<2x16x1xi32>
    %84 = arith.subi %83, %82 : vector<2x16x1xi32>
    %85 = vector.broadcast %80 : vector<2x16x1xi32> to vector<2x16x16xi32>
    %86 = arith.cmpi eq, %78, %85 : vector<2x16x16xi32>
    %c-2147483648_i32_33 = arith.constant -2147483648 : i32
    %87 = vector.broadcast %c-2147483648_i32_33 : i32 to vector<2x16x16xi32>
    %88 = arith.select %86, %87, %78 : vector<2x16x16xi1>, vector<2x16x16xi32>
    %cst_34 = arith.constant dense<-2147483648> : vector<2x16xi32>
    %89 = vector.multi_reduction <maxsi>, %88, %cst_34 [2] : vector<2x16x16xi32> to vector<2x16xi32>
    %90 = vector.shape_cast %89 : vector<2x16xi32> to vector<2x16x1xi32>
    %c15_i32_35 = arith.constant 15 : i32
    %91 = vector.broadcast %c15_i32_35 : i32 to vector<2x16x1xi32>
    %92 = arith.andi %90, %91 : vector<2x16x1xi32>
    %c15_i32_36 = arith.constant 15 : i32
    %93 = vector.broadcast %c15_i32_36 : i32 to vector<2x16x1xi32>
    %94 = arith.subi %93, %92 : vector<2x16x1xi32>
    %95 = vector.broadcast %90 : vector<2x16x1xi32> to vector<2x16x16xi32>
    %96 = arith.cmpi eq, %88, %95 : vector<2x16x16xi32>
    %c-2147483648_i32_37 = arith.constant -2147483648 : i32
    %97 = vector.broadcast %c-2147483648_i32_37 : i32 to vector<2x16x16xi32>
    %98 = arith.select %96, %97, %88 : vector<2x16x16xi1>, vector<2x16x16xi32>
    %cst_38 = arith.constant dense<-2147483648> : vector<2x16xi32>
    %99 = vector.multi_reduction <maxsi>, %98, %cst_38 [2] : vector<2x16x16xi32> to vector<2x16xi32>
    %100 = vector.shape_cast %99 : vector<2x16xi32> to vector<2x16x1xi32>
    %c15_i32_39 = arith.constant 15 : i32
    %101 = vector.broadcast %c15_i32_39 : i32 to vector<2x16x1xi32>
    %102 = arith.andi %100, %101 : vector<2x16x1xi32>
    %c15_i32_40 = arith.constant 15 : i32
    %103 = vector.broadcast %c15_i32_40 : i32 to vector<2x16x1xi32>
    %104 = arith.subi %103, %102 : vector<2x16x1xi32>
    %105 = vector.broadcast %100 : vector<2x16x1xi32> to vector<2x16x16xi32>
    %106 = arith.cmpi eq, %98, %105 : vector<2x16x16xi32>
    %c-2147483648_i32_41 = arith.constant -2147483648 : i32
    %107 = vector.broadcast %c-2147483648_i32_41 : i32 to vector<2x16x16xi32>
    %108 = arith.select %106, %107, %98 : vector<2x16x16xi1>, vector<2x16x16xi32>
    %cst_42 = arith.constant dense<-2147483648> : vector<2x16xi32>
    %109 = vector.multi_reduction <maxsi>, %108, %cst_42 [2] : vector<2x16x16xi32> to vector<2x16xi32>
    %110 = vector.shape_cast %109 : vector<2x16xi32> to vector<2x16x1xi32>
    %c15_i32_43 = arith.constant 15 : i32
    %111 = vector.broadcast %c15_i32_43 : i32 to vector<2x16x1xi32>
    %112 = arith.andi %110, %111 : vector<2x16x1xi32>
    %c15_i32_44 = arith.constant 15 : i32
    %113 = vector.broadcast %c15_i32_44 : i32 to vector<2x16x1xi32>
    %114 = arith.subi %113, %112 : vector<2x16x1xi32>
    %115 = vector.broadcast %110 : vector<2x16x1xi32> to vector<2x16x16xi32>
    %116 = arith.cmpi eq, %108, %115 : vector<2x16x16xi32>
    %c-2147483648_i32_45 = arith.constant -2147483648 : i32
    %117 = vector.broadcast %c-2147483648_i32_45 : i32 to vector<2x16x16xi32>
    %118 = arith.select %116, %117, %108 : vector<2x16x16xi1>, vector<2x16x16xi32>
    %cst_46 = arith.constant dense<-2147483648> : vector<2x16xi32>
    %119 = vector.multi_reduction <maxsi>, %118, %cst_46 [2] : vector<2x16x16xi32> to vector<2x16xi32>
    %120 = vector.shape_cast %119 : vector<2x16xi32> to vector<2x16x1xi32>
    %c15_i32_47 = arith.constant 15 : i32
    %121 = vector.broadcast %c15_i32_47 : i32 to vector<2x16x1xi32>
    %122 = arith.andi %120, %121 : vector<2x16x1xi32>
    %c15_i32_48 = arith.constant 15 : i32
    %123 = vector.broadcast %c15_i32_48 : i32 to vector<2x16x1xi32>
    %124 = arith.subi %123, %122 : vector<2x16x1xi32>
    %125 = vector.broadcast %120 : vector<2x16x1xi32> to vector<2x16x16xi32>
    %126 = arith.cmpi eq, %118, %125 : vector<2x16x16xi32>
    %c-2147483648_i32_49 = arith.constant -2147483648 : i32
    %127 = vector.broadcast %c-2147483648_i32_49 : i32 to vector<2x16x16xi32>
    %128 = arith.select %126, %127, %118 : vector<2x16x16xi1>, vector<2x16x16xi32>
    %cst_50 = arith.constant dense<-2147483648> : vector<2x16xi32>
    %129 = vector.multi_reduction <maxsi>, %128, %cst_50 [2] : vector<2x16x16xi32> to vector<2x16xi32>
    %130 = vector.shape_cast %129 : vector<2x16xi32> to vector<2x16x1xi32>
    %c15_i32_51 = arith.constant 15 : i32
    %131 = vector.broadcast %c15_i32_51 : i32 to vector<2x16x1xi32>
    %132 = arith.andi %130, %131 : vector<2x16x1xi32>
    %c15_i32_52 = arith.constant 15 : i32
    %133 = vector.broadcast %c15_i32_52 : i32 to vector<2x16x1xi32>
    %134 = arith.subi %133, %132 : vector<2x16x1xi32>
    %135 = vector.broadcast %130 : vector<2x16x1xi32> to vector<2x16x16xi32>
    %136 = arith.cmpi eq, %128, %135 : vector<2x16x16xi32>
    %c-2147483648_i32_53 = arith.constant -2147483648 : i32
    %137 = vector.broadcast %c-2147483648_i32_53 : i32 to vector<2x16x16xi32>
    %138 = arith.select %136, %137, %128 : vector<2x16x16xi1>, vector<2x16x16xi32>
    %cst_54 = arith.constant dense<-2147483648> : vector<2x16xi32>
    %139 = vector.multi_reduction <maxsi>, %138, %cst_54 [2] : vector<2x16x16xi32> to vector<2x16xi32>
    %140 = vector.shape_cast %139 : vector<2x16xi32> to vector<2x16x1xi32>
    %c15_i32_55 = arith.constant 15 : i32
    %141 = vector.broadcast %c15_i32_55 : i32 to vector<2x16x1xi32>
    %142 = arith.andi %140, %141 : vector<2x16x1xi32>
    %c15_i32_56 = arith.constant 15 : i32
    %143 = vector.broadcast %c15_i32_56 : i32 to vector<2x16x1xi32>
    %144 = arith.subi %143, %142 : vector<2x16x1xi32>
    %145 = tpu.concatenate %64, %74, %84, %94, %104, %114, %124, %134, %144 in 2 : vector<2x16x1xi32>, vector<2x16x1xi32>, vector<2x16x1xi32>, vector<2x16x1xi32>, vector<2x16x1xi32>, vector<2x16x1xi32>, vector<2x16x1xi32>, vector<2x16x1xi32>, vector<2x16x1xi32> -> vector<2x16x9xi32>
    %c0_57 = arith.constant 0 : index
    %c0_58 = arith.constant 0 : index
    %c0_59 = arith.constant 0 : index
    %146 = vector.load %arg8[%c0_57, %c0_58, %c0_59] : memref<2x16x9xi32, #tpu.memory_space<vmem>>, vector<2x16x9xi32>
    tpu.vector_store %arg8[%c0_57, %c0_58, %c0_59], %145 {strides = array<i32>} : memref<2x16x9xi32, #tpu.memory_space<vmem>>, vector<2x16x9xi32>,
    return
  }
  func.func @transform_0(%arg0: i32, %arg1: i32) -> (i32, i32, i32) {
    %c0_i32 = arith.constant 0 : i32
    %c0_i32_0 = arith.constant 0 : i32
    %c0_i32_1 = arith.constant 0 : i32
    return %arg0, %c0_i32, %c0_i32_0 : i32, i32, i32
  }
  func.func @transform_1(%arg0: i32, %arg1: i32) -> (i32, i32, i32) {
    %c0_i32 = arith.constant 0 : i32
    %c0_i32_0 = arith.constant 0 : i32
    return %arg0, %arg1, %c0_i32 : i32, i32, i32
  }
  func.func @transform_2(%arg0: i32, %arg1: i32) -> (i32, i32) {
    %c0_i32 = arith.constant 0 : i32
    %c0_i32_0 = arith.constant 0 : i32
    %c0_i32_1 = arith.constant 0 : i32
    return %c0_i32, %c0_i32_0 : i32, i32
  }
  func.func @transform_3(%arg0: i32, %arg1: i32) -> (i32, i32) {
    %c0_i32 = arith.constant 0 : i32
    %c0_i32_0 = arith.constant 0 : i32
    %c0_i32_1 = arith.constant 0 : i32
    return %c0_i32, %c0_i32_0 : i32, i32
  }
  func.func @transform_4(%arg0: i32, %arg1: i32) -> (i32, i32, i32) {
    %c0_i32 = arith.constant 0 : i32
    %c0_i32_0 = arith.constant 0 : i32
    return %arg0, %arg1, %c0_i32 : i32, i32, i32
  }
  func.func @transform_5(%arg0: i32, %arg1: i32) -> (i32, i32, i32) {
    %c0_i32 = arith.constant 0 : i32
    %c0_i32_0 = arith.constant 0 : i32
    return %arg0, %arg1, %c0_i32 : i32, i32, i32
  }
  func.func @transform_6(%arg0: i32, %arg1: i32) -> (i32, i32, i32) {
    %c0_i32 = arith.constant 0 : i32
    %c0_i32_0 = arith.constant 0 : i32
    return %arg0, %arg1, %c0_i32 : i32, i32, i32
  }
}

</mosaic_0001>

<llo_original>
// kernel: dense_dilated_knn_graph.1
$region0: #{dense_dilated_knn_graph.1}
  #allocation0 [shape = 'u32[]', space=smem, size = 0x4, offset = 0x4, fixed_abs, tag = 'smem constant byte address 0x4 - core index']
  #allocation1 [shape = 'u32[72,128]{1,0:T(1,128)}', space=vmem, size = 0x9000, scoped, tag = 'internal scratch']
  %s0 = inlined_call_operand.vmem [shape: bf16[4,16,512], index: 0, kind: input, shape index: {}, may-alias: {0,1}]
  %s1 = inlined_call_operand.vmem [shape: bf16[4,16,512], index: 1, kind: input, shape index: {}, may-alias: {0,1}]
  %s2 = inlined_call_operand.vmem [shape: bf16[512,256], index: 2, kind: input, shape index: {}]
  %s3 = inlined_call_operand.vmem [shape: f32[1,256], index: 3, kind: input, shape index: {}]
  %s4 = inlined_call_operand.vmem [shape: bf16[4,16,16], index: 4, kind: input, shape index: {}]
  %s5 = inlined_call_operand.hbm [shape: f32[4,16,16], index: 5, kind: output, shape index: {0}]
  %s6 = inlined_call_operand.vmem [shape: s32[4,16,9], index: 6, kind: output, shape index: {1}]
  %7 = xla_tuple %s5, %s6
  %s8 = sld [smem:[#allocation0]]
  $region61: #{dense_dilated_knn_graph.1} parent=0
    _
  %s10 = ssub.s32 1, %s8
  %s11 = scalar_select 0, %s10, %s8
  $region1: #{dense_dilated_knn_graph.1} parent=0
    #allocation2 [shape = 'u8[32768]{0}', space=vmem, size = 0x8000, scoped, tag = 'output window, operand 0']
    #allocation3 [shape = 's32[2]{0}', space=sflag, size = 0x8, scoped, tag = 'scoped memory for dense_dilated_knn_graph.1']
    %12 = vsyncpa [#allocation3], 0
    %s13 = scalar_lea.sflag [#allocation3], 1
    %14 = vsyncpa %s13, 0
    loop: start=0, step=1, limit=4
    $region2: #{dense_dilated_knn_graph.1} parent=1 // loop_pre_header
      _
    $region3: #{dense_dilated_knn_graph.1} parent=1 // loop_header
      %s16 = sphi 0, %s20
      %p17 = scmp.ge.s32.totalorder %s16, 4
      %s23 = sphi 0, %s35
      %s24 = sphi 0, %s31
      %s25 = sphi 0, %s23
      %s26 = sphi 0, %s24
      %s27 = sphi 0, %s25
      %s28 = sphi 0, %s26
      %s38 = sphi 0, %s40
      %s41 = sphi 0, %s38
      %s42 = sphi 0, %s41
      %s58 = sphi 0, %s42
      %s66 = sphi 0, %s68
      %s69 = sphi 0, %s66
      %s70 = sphi 0, %s69
      %s86 = sphi 0, %s70
      %s90 = sphi 0, %s90
      %s92 = sphi 0, %s90
      %s93 = sphi 0, %s92
      %s107 = sphi 0, %s93
      %s111 = sphi 0, %s111
      %s113 = sphi 0, %s111
      %s114 = sphi 0, %s113
      %s128 = sphi 0, %s114
      %s136 = sphi 0, %s138
      %s139 = sphi 0, %s136
      %s140 = sphi 0, %s139
      %s156 = sphi 0, %s140
      %s164 = sphi 0, %s166
      %s167 = sphi 0, %s164
      %s168 = sphi 0, %s167
      %s184 = sphi 0, %s168
      %s192 = sphi 0, %s194
      %s195 = sphi 0, %s192
      %s196 = sphi 0, %s195
      %s212 = sphi 0, %s196
    $region4: #{dense_dilated_knn_graph.1} parent=1 // loop_header_branch
      %19 = sbr.rel (%p17) target = $region8
    $region5: #{dense_dilated_knn_graph.1} parent=1 // loop_body
      %s21 = ssub.s32 %s16, 1
      %s22 = ssub.s32 %s16, 2
      %s29 = sadd.s32 1, %s24
      %p30 = scmp.ge.s32.totalorder %s29, 1
      %s31 = scalar_select %p30, 0, %s29
      %s32 = sadd.s32 1, %s23
      %s33 = scalar_select %p30, %s32, %s23
      %p34 = scmp.ge.s32.totalorder %s33, 2
      %s35 = scalar_select %p34, 0, %s33
      %s36 = ssub.s32 %s23, %s35
      %p37 = scmp.eq.s32.totalorder %s36, 0
      %s39 = sadd.s32 %s38, 1
      %s40 = scalar_select %p37, %s38, %s39
      %p43 = pneg %p37
      %p44 = scmp.eq.s32.totalorder %s16, 1
      %p45 = por %p43, %p44
      %p46 = scmp.ne.s32.totalorder %s38, %s41
      %p47 = scmp.eq.s32.totalorder %s16, 0
      %p48 = por %p46, %p47
      %p49 = scmp.ne.s32.totalorder %s38, %s41
      %p50 = scmp.eq.s32.totalorder %s21, 1
      %p51 = por %p49, %p50
      %p52 = scmp.ne.s32.totalorder %s41, %s42
      %p53 = scmp.eq.s32.totalorder %s21, 0
      %p54 = por %p52, %p53
      %p55 = scmp.ne.s32.totalorder %s41, %s42
      %p56 = scmp.eq.s32.totalorder %s22, 1
      %p57 = por %p55, %p56
      %p59 = scmp.ne.s32.totalorder %s42, %s58
      %p60 = scmp.eq.s32.totalorder %s22, 0
      %p61 = por %p59, %p60
      %s62 = ssub.s32 %s23, %s35
      %s63 = ssub.s32 %s24, %s31
      %s64 = sor.u32 %s62, %s63
      %p65 = scmp.eq.s32.totalorder %s64, 0
      %s67 = sadd.s32 %s66, 1
      %s68 = scalar_select %p65, %s66, %s67
      %p71 = pneg %p65
      %p72 = scmp.eq.s32.totalorder %s16, 1
      %p73 = por %p71, %p72
      %p74 = scmp.ne.s32.totalorder %s66, %s69
      %p75 = scmp.eq.s32.totalorder %s16, 0
      %p76 = por %p74, %p75
      %p77 = scmp.ne.s32.totalorder %s66, %s69
      %p78 = scmp.eq.s32.totalorder %s21, 1
      %p79 = por %p77, %p78
      %p80 = scmp.ne.s32.totalorder %s69, %s70
      %p81 = scmp.eq.s32.totalorder %s21, 0
      %p82 = por %p80, %p81
      %p83 = scmp.ne.s32.totalorder %s69, %s70
      %p84 = scmp.eq.s32.totalorder %s22, 1
      %p85 = por %p83, %p84
      %p87 = scmp.ne.s32.totalorder %s70, %s86
      %p88 = scmp.eq.s32.totalorder %s22, 0
      %p89 = por %p87, %p88
      %s91 = sadd.s32 %s90, 1
      %p94 = scmp.eq.s32.totalorder %s16, 1
      %p95 = scmp.ne.s32.totalorder %s90, %s92
      %p96 = scmp.eq.s32.totalorder %s16, 0
      %p97 = por %p95, %p96
      %p98 = scmp.ne.s32.totalorder %s90, %s92
      %p99 = scmp.eq.s32.totalorder %s21, 1
      %p100 = por %p98, %p99
      %p101 = scmp.ne.s32.totalorder %s92, %s93
      %p102 = scmp.eq.s32.totalorder %s21, 0
      %p103 = por %p101, %p102
      %p104 = scmp.ne.s32.totalorder %s92, %s93
      %p105 = scmp.eq.s32.totalorder %s22, 1
      %p106 = por %p104, %p105
      %p108 = scmp.ne.s32.totalorder %s93, %s107
      %p109 = scmp.eq.s32.totalorder %s22, 0
      %p110 = por %p108, %p109
      %s112 = sadd.s32 %s111, 1
      %p115 = scmp.eq.s32.totalorder %s16, 1
      %p116 = scmp.ne.s32.totalorder %s111, %s113
      %p117 = scmp.eq.s32.totalorder %s16, 0
      %p118 = por %p116, %p117
      %p119 = scmp.ne.s32.totalorder %s111, %s113
      %p120 = scmp.eq.s32.totalorder %s21, 1
      %p121 = por %p119, %p120
      %p122 = scmp.ne.s32.totalorder %s113, %s114
      %p123 = scmp.eq.s32.totalorder %s21, 0
      %p124 = por %p122, %p123
      %p125 = scmp.ne.s32.totalorder %s113, %s114
      %p126 = scmp.eq.s32.totalorder %s22, 1
      %p127 = por %p125, %p126
      %p129 = scmp.ne.s32.totalorder %s114, %s128
      %p130 = scmp.eq.s32.totalorder %s22, 0
      %p131 = por %p129, %p130
      %s132 = ssub.s32 %s23, %s35
      %s133 = ssub.s32 %s24, %s31
      %s134 = sor.u32 %s132, %s133
      %p135 = scmp.eq.s32.totalorder %s134, 0
      %s137 = sadd.s32 %s136, 1
      %s138 = scalar_select %p135, %s136, %s137
      %p141 = pneg %p135
      %p142 = scmp.eq.s32.totalorder %s16, 1
      %p143 = por %p141, %p142
      %p144 = scmp.ne.s32.totalorder %s136, %s139
      %p145 = scmp.eq.s32.totalorder %s16, 0
      %p146 = por %p144, %p145
      %p147 = scmp.ne.s32.totalorder %s136, %s139
      %p148 = scmp.eq.s32.totalorder %s21, 1
      %p149 = por %p147, %p148
      %p150 = scmp.ne.s32.totalorder %s139, %s140
      %p151 = scmp.eq.s32.totalorder %s21, 0
      %p152 = por %p150, %p151
      %p153 = scmp.ne.s32.totalorder %s139, %s140
      %p154 = scmp.eq.s32.totalorder %s22, 1
      %p155 = por %p153, %p154
      %p157 = scmp.ne.s32.totalorder %s140, %s156
      %p158 = scmp.eq.s32.totalorder %s22, 0
      %p159 = por %p157, %p158
      %s160 = ssub.s32 %s23, %s35
      %s161 = ssub.s32 %s24, %s31
      %s162 = sor.u32 %s160, %s161
      %p163 = scmp.eq.s32.totalorder %s162, 0
      %s165 = sadd.s32 %s164, 1
      %s166 = scalar_select %p163, %s164, %s165
      %p169 = pneg %p163
      %p170 = scmp.eq.s32.totalorder %s16, 1
      %p171 = por %p169, %p170
      %p172 = scmp.ne.s32.totalorder %s164, %s167
      %p173 = scmp.eq.s32.totalorder %s16, 0
      %p174 = por %p172, %p173
      %p175 = scmp.ne.s32.totalorder %s164, %s167
      %p176 = scmp.eq.s32.totalorder %s21, 1
      %p177 = por %p175, %p176
      %p178 = scmp.ne.s32.totalorder %s167, %s168
      %p179 = scmp.eq.s32.totalorder %s21, 0
      %p180 = por %p178, %p179
      %p181 = scmp.ne.s32.totalorder %s167, %s168
      %p182 = scmp.eq.s32.totalorder %s22, 1
      %p183 = por %p181, %p182
      %p185 = scmp.ne.s32.totalorder %s168, %s184
      %p186 = scmp.eq.s32.totalorder %s22, 0
      %p187 = por %p185, %p186
      %s188 = ssub.s32 %s23, %s35
      %s189 = ssub.s32 %s24, %s31
      %s190 = sor.u32 %s188, %s189
      %p191 = scmp.eq.s32.totalorder %s190, 0
      %s193 = sadd.s32 %s192, 1
      %s194 = scalar_select %p191, %s192, %s193
      %p197 = pneg %p191
      %p198 = scmp.eq.s32.totalorder %s16, 1
      %p199 = por %p197, %p198
      %p200 = scmp.ne.s32.totalorder %s192, %s195
      %p201 = scmp.eq.s32.totalorder %s16, 0
      %p202 = por %p200, %p201
      %p203 = scmp.ne.s32.totalorder %s192, %s195
      %p204 = scmp.eq.s32.totalorder %s21, 1
      %p205 = por %p203, %p204
      %p206 = scmp.ne.s32.totalorder %s195, %s196
      %p207 = scmp.eq.s32.totalorder %s21, 0
      %p208 = por %p206, %p207
      %p209 = scmp.ne.s32.totalorder %s195, %s196
      %p210 = scmp.eq.s32.totalorder %s22, 1
      %p211 = por %p209, %p210
      %p213 = scmp.ne.s32.totalorder %s196, %s212
      %p214 = scmp.eq.s32.totalorder %s22, 0
      %p215 = por %p213, %p214
      %p216 = scmp.le.s32.totalorder 1, %s16
      %p217 = scmp.lt.s32.totalorder %s16, 3
      %p218 = pnand %p216, %p217
      %p219 = pneg %p218
      // Predicated region
      $region9: #{dense_dilated_knn_graph.1} parent=5 // pred_check
        _
      $region10: #{dense_dilated_knn_graph.1} parent=5 // pred_check_branch
        %221 = sbr.rel (%p218) target = $region12
      $region11: #{dense_dilated_knn_graph.1} parent=5 // pred_region
        %s222 = ssub.s32 %s16, 1
        // Predicated region
        $region13: #{dense_dilated_knn_graph.1} parent=11 // pred_check
          %p223 = pneg %p103
        $region14: #{dense_dilated_knn_graph.1} parent=11 // pred_check_branch
          %225 = sbr.rel (%p223) target = $region16
        $region15: #{dense_dilated_knn_graph.1} parent=11 // pred_region
          _
        $region16: #{dense_dilated_knn_graph.1} parent=11 // pred_fallthru
          _
        // Predicated region
        $region17: #{dense_dilated_knn_graph.1} parent=11 // pred_check
          %p226 = pneg %p124
        $region18: #{dense_dilated_knn_graph.1} parent=11 // pred_check_branch
          %228 = sbr.rel (%p226) target = $region20
        $region19: #{dense_dilated_knn_graph.1} parent=11 // pred_region
          _
        $region20: #{dense_dilated_knn_graph.1} parent=11 // pred_fallthru
          _
      $region12: #{dense_dilated_knn_graph.1} parent=5 // pred_fallthru
        _
      %p229 = scmp.lt.s32.totalorder %s16, 2
      // Predicated region
      $region21: #{dense_dilated_knn_graph.1} parent=5 // pred_check
        %p230 = pneg %p229
      $region22: #{dense_dilated_knn_graph.1} parent=5 // pred_check_branch
        %232 = sbr.rel (%p230) target = $region24
      $region23: #{dense_dilated_knn_graph.1} parent=5 // pred_region
        // Predicated region
        $region25: #{dense_dilated_knn_graph.1} parent=23 // pred_check
          %p233 = pneg %p48
        $region26: #{dense_dilated_knn_graph.1} parent=23 // pred_check_branch
          %235 = sbr.rel (%p233) target = $region28
        $region27: #{dense_dilated_knn_graph.1} parent=23 // pred_region
          %s236 = smul.u32 2, %s23
          %p237 = scmp.lt.s32.totalorder %s236, 3
          %s238 = scalar_select %p237, %s236, 3
          %s239 = smul.addr %s238, 8
          %s240 = smul.addr %s239, 4
          %s241 = scalar_lea.vmem %s0, %s240
          %s242 = smul.u32 2, %s23
        $region28: #{dense_dilated_knn_graph.1} parent=23 // pred_fallthru
          _
        // Predicated region
        $region29: #{dense_dilated_knn_graph.1} parent=23 // pred_check
          %p243 = pneg %p76
        $region30: #{dense_dilated_knn_graph.1} parent=23 // pred_check_branch
          %245 = sbr.rel (%p243) target = $region32
        $region31: #{dense_dilated_knn_graph.1} parent=23 // pred_region
          %s246 = smul.u32 2, %s23
          %s247 = smul.u32 2, %s24
          %p248 = scmp.lt.s32.totalorder %s246, 3
          %s249 = scalar_select %p248, %s246, 3
          %p250 = scmp.lt.s32.totalorder %s247, 1
          %s251 = scalar_select %p250, %s247, 1
          %s252 = smul.addr %s251, 4
          %s253 = smul.addr %s249, 8
          %s254 = sadd.s32 %s252, %s253
          %s255 = smul.addr %s254, 4
          %s256 = scalar_lea.vmem %s1, %s255
          %s257 = smul.u32 2, %s23
          %s258 = smul.u32 2, %s24
        $region32: #{dense_dilated_knn_graph.1} parent=23 // pred_fallthru
          _
        // Predicated region
        $region33: #{dense_dilated_knn_graph.1} parent=23 // pred_check
          %p259 = pneg %p146
        $region34: #{dense_dilated_knn_graph.1} parent=23 // pred_check_branch
          %261 = sbr.rel (%p259) target = $region36
        $region35: #{dense_dilated_knn_graph.1} parent=23 // pred_region
          %s262 = smul.u32 2, %s23
          %s263 = smul.u32 2, %s24
          %p264 = scmp.lt.s32.totalorder %s262, 3
          %s265 = scalar_select %p264, %s262, 3
          %p266 = scmp.lt.s32.totalorder %s263, 1
          %s267 = scalar_select %p266, %s263, 1
          %s268 = smul.addr %s265, 2
          %s269 = sadd.s32 %s267, %s268
          %s270 = smul.addr %s269, 4
          %s271 = scalar_lea.vmem %s4, %s270
          %s272 = smul.u32 2, %s23
          %s273 = smul.u32 2, %s24
        $region36: #{dense_dilated_knn_graph.1} parent=23 // pred_fallthru
          _
      $region24: #{dense_dilated_knn_graph.1} parent=5 // pred_fallthru
        _
      %p274 = scmp.le.s32.totalorder 1, %s16
      %p275 = scmp.lt.s32.totalorder %s16, 3
      %p276 = pnand %p274, %p275
      %p277 = pneg %p276
      // Predicated region
      $region37: #{dense_dilated_knn_graph.1} parent=5 // pred_check
        _
      $region38: #{dense_dilated_knn_graph.1} parent=5 // pred_check_branch
        %279 = sbr.rel (%p276) target = $region40
      $region39: #{dense_dilated_knn_graph.1} parent=5 // pred_region
        %s280 = ssub.s32 %s16, 1
        %s281 = smul.u32 2, %s25
        %p282 = scmp.lt.s32.totalorder %s281, 3
        %s283 = scalar_select %p282, %s281, 3
        %s284 = smul.addr %s283, 8
        %s285 = smul.addr %s284, 4
        %s286 = scalar_lea.vmem %s0, %s285
        %p287 = pneg %p54
        %p288 = pneg %p51
        %s289 = smul.u32 2, %s25
        %s290 = smul.u32 2, %s26
        %p291 = scmp.lt.s32.totalorder %s289, 3
        %s292 = scalar_select %p291, %s289, 3
        %p293 = scmp.lt.s32.totalorder %s290, 1
        %s294 = scalar_select %p293, %s290, 1
        %s295 = smul.addr %s294, 4
        %s296 = smul.addr %s292, 8
        %s297 = sadd.s32 %s295, %s296
        %s298 = smul.addr %s297, 4
        %s299 = scalar_lea.vmem %s1, %s298
        %p300 = pneg %p82
        %p301 = pneg %p79
        %p302 = pneg %p103
        %p303 = pneg %p100
        %p304 = pneg %p124
        %p305 = pneg %p121
        %s306 = smul.u32 2, %s25
        %s307 = smul.u32 2, %s26
        %p308 = scmp.lt.s32.totalorder %s306, 3
        %s309 = scalar_select %p308, %s306, 3
        %p310 = scmp.lt.s32.totalorder %s307, 1
        %s311 = scalar_select %p310, %s307, 1
        %s312 = smul.addr %s309, 2
        %s313 = sadd.s32 %s311, %s312
        %s314 = smul.addr %s313, 4
        %s315 = scalar_lea.vmem %s4, %s314
        %p316 = pneg %p152
        %p317 = pneg %p149
        %p318 = pneg %p180
        %p319 = pneg %p177
        %s320 = sand.u32 %s167, 1
        %s321 = scalar_lea.sflag [#allocation3], %s320
        %s322 = sand.u32 %s167, 1
        %s323 = smul.addr %s322, 32
        %s324 = scalar_lea.vmem [#allocation2], %s323
        %p325 = pneg %p208
        %p326 = pneg %p205
        %s327 = smul.u32 2, %s25
        %s328 = smul.u32 2, %s26
        %p329 = scmp.lt.s32.totalorder %s327, 3
        %s330 = scalar_select %p329, %s327, 3
        %p331 = scmp.lt.s32.totalorder %s328, 1
        %s332 = scalar_select %p331, %s328, 1
        %s333 = smul.addr %s330, 2
        %s334 = sadd.s32 %s332, %s333
        %s335 = smul.addr %s334, 8
        %s336 = scalar_lea.vmem %s6, %s335
        %s337 = smul.u32 2, %s25
        %p338 = scmp.lt.s32.totalorder %s337, 3
        %s339 = scalar_select %p338, %s337, 3
        %s340 = smul.addr %s339, 8
        %s341 = smul.addr %s340, 4
        %s342 = scalar_lea.vmem %s0, %s341
        %s343 = smul.u32 2, %s25
        %s344 = smul.u32 2, %s25
        %s345 = smul.u32 2, %s26
        %p346 = scmp.lt.s32.totalorder %s344, 3
        %s347 = scalar_select %p346, %s344, 3
        %p348 = scmp.lt.s32.totalorder %s345, 1
        %s349 = scalar_select %p348, %s345, 1
        %s350 = smul.addr %s349, 4
        %s351 = smul.addr %s347, 8
        %s352 = sadd.s32 %s350, %s351
        %s353 = smul.addr %s352, 4
        %s354 = scalar_lea.vmem %s1, %s353
        %s355 = smul.u32 2, %s25
        %s356 = smul.u32 2, %s26
        %s357 = smul.u32 2, %s25
        %s358 = smul.u32 2, %s26
        %p359 = scmp.lt.s32.totalorder %s357, 3
        %s360 = scalar_select %p359, %s357, 3
        %p361 = scmp.lt.s32.totalorder %s358, 1
        %s362 = scalar_select %p361, %s358, 1
        %s363 = smul.addr %s360, 2
        %s364 = sadd.s32 %s362, %s363
        %s365 = smul.addr %s364, 4
        %s366 = scalar_lea.vmem %s4, %s365
        %s367 = smul.u32 2, %s25
        %s368 = smul.u32 2, %s26
        %s369 = smul.u32 2, %s25
        %s370 = smul.u32 2, %s26
        %s371 = smul.u32 2, %s25
        %s372 = smul.u32 2, %s26
        %p373 = scmp.lt.s32.totalorder %s371, 3
        %s374 = scalar_select %p373, %s371, 3
        %p375 = scmp.lt.s32.totalorder %s372, 1
        %s376 = scalar_select %p375, %s372, 1
        %s377 = smul.addr %s374, 2
        %s378 = sadd.s32 %s376, %s377
        %s379 = smul.addr %s378, 8
        %s380 = scalar_lea.vmem %s6, %s379
        %s381 = smul.u32 2, %s25
        %s382 = smul.u32 2, %s26
        %v384 = vld [vmem:[%s2] sm:$0xff]
        %v385 = vld [vmem:[%s2 + $0x8] sm:$0xff]
        %v386 = vld [vmem:[%s2 + $0x10] sm:$0xff]
        %v387 = vld [vmem:[%s2 + $0x18] sm:$0xff]
        %v388 = vld [vmem:[%s2 + $0x20] sm:$0xff]
        %v389 = vld [vmem:[%s2 + $0x28] sm:$0xff]
        %v390 = vld [vmem:[%s2 + $0x30] sm:$0xff]
        %v391 = vld [vmem:[%s2 + $0x38] sm:$0xff]
        %v392 = vld [vmem:[%s2 + $0x40] sm:$0xff]
        %v393 = vld [vmem:[%s2 + $0x48] sm:$0xff]
        %v394 = vld [vmem:[%s2 + $0x50] sm:$0xff]
        %v395 = vld [vmem:[%s2 + $0x58] sm:$0xff]
        %v396 = vld [vmem:[%s2 + $0x60] sm:$0xff]
        %v397 = vld [vmem:[%s2 + $0x68] sm:$0xff]
        %v398 = vld [vmem:[%s2 + $0x70] sm:$0xff]
        %v399 = vld [vmem:[%s2 + $0x78] sm:$0xff]
        %v400 = vld [vmem:[%s2 + $0x80] sm:$0xff]
        %v401 = vld [vmem:[%s2 + $0x88] sm:$0xff]
        %v402 = vld [vmem:[%s2 + $0x90] sm:$0xff]
        %v403 = vld [vmem:[%s2 + $0x98] sm:$0xff]
        %v404 = vld [vmem:[%s2 + $0xa0] sm:$0xff]
        %v405 = vld [vmem:[%s2 + $0xa8] sm:$0xff]
        %v406 = vld [vmem:[%s2 + $0xb0] sm:$0xff]
        %v407 = vld [vmem:[%s2 + $0xb8] sm:$0xff]
        %v408 = vld [vmem:[%s2 + $0xc0] sm:$0xff]
        %v409 = vld [vmem:[%s2 + $0xc8] sm:$0xff]
        %v410 = vld [vmem:[%s2 + $0xd0] sm:$0xff]
        %v411 = vld [vmem:[%s2 + $0xd8] sm:$0xff]
        %v412 = vld [vmem:[%s2 + $0xe0] sm:$0xff]
        %v413 = vld [vmem:[%s2 + $0xe8] sm:$0xff]
        %v414 = vld [vmem:[%s2 + $0xf0] sm:$0xff]
        %v415 = vld [vmem:[%s2 + $0xf8] sm:$0xff]
        %v416 = vld [vmem:[%s2 + $0x100] sm:$0xff]
        %v417 = vld [vmem:[%s2 + $0x108] sm:$0xff]
        %v418 = vld [vmem:[%s2 + $0x110] sm:$0xff]
        %v419 = vld [vmem:[%s2 + $0x118] sm:$0xff]
        %v420 = vld [vmem:[%s2 + $0x120] sm:$0xff]
        %v421 = vld [vmem:[%s2 + $0x128] sm:$0xff]
        %v422 = vld [vmem:[%s2 + $0x130] sm:$0xff]
        %v423 = vld [vmem:[%s2 + $0x138] sm:$0xff]
        %v424 = vld [vmem:[%s2 + $0x140] sm:$0xff]
        %v425 = vld [vmem:[%s2 + $0x148] sm:$0xff]
        %v426 = vld [vmem:[%s2 + $0x150] sm:$0xff]
        %v427 = vld [vmem:[%s2 + $0x158] sm:$0xff]
        %v428 = vld [vmem:[%s2 + $0x160] sm:$0xff]
        %v429 = vld [vmem:[%s2 + $0x168] sm:$0xff]
        %v430 = vld [vmem:[%s2 + $0x170] sm:$0xff]
        %v431 = vld [vmem:[%s2 + $0x178] sm:$0xff]
        %v432 = vld [vmem:[%s2 + $0x180] sm:$0xff]
        %v433 = vld [vmem:[%s2 + $0x188] sm:$0xff]
        %v434 = vld [vmem:[%s2 + $0x190] sm:$0xff]
        %v435 = vld [vmem:[%s2 + $0x198] sm:$0xff]
        %v436 = vld [vmem:[%s2 + $0x1a0] sm:$0xff]
        %v437 = vld [vmem:[%s2 + $0x1a8] sm:$0xff]
        %v438 = vld [vmem:[%s2 + $0x1b0] sm:$0xff]
        %v439 = vld [vmem:[%s2 + $0x1b8] sm:$0xff]
        %v440 = vld [vmem:[%s2 + $0x1c0] sm:$0xff]
        %v441 = vld [vmem:[%s2 + $0x1c8] sm:$0xff]
        %v442 = vld [vmem:[%s2 + $0x1d0] sm:$0xff]
        %v443 = vld [vmem:[%s2 + $0x1d8] sm:$0xff]
        %v444 = vld [vmem:[%s2 + $0x1e0] sm:$0xff]
        %v445 = vld [vmem:[%s2 + $0x1e8] sm:$0xff]
        %v446 = vld [vmem:[%s2 + $0x1f0] sm:$0xff]
        %v447 = vld [vmem:[%s2 + $0x1f8] sm:$0xff]
        %v448 = vld [vmem:[%s3] sm:$0x3]
        %v449 = vld [vmem:[%s342] sm:$0xff]
        %v450 = vld [vmem:[%s342 + $0x8] sm:$0xff]
        %v451 = vld [vmem:[%s342 + $0x10] sm:$0xff]
        %v452 = vld [vmem:[%s342 + $0x18] sm:$0xff]
        %v453 = vld [vmem:[%s342 + $0x20] sm:$0xff]
        %v454 = vld [vmem:[%s342 + $0x28] sm:$0xff]
        %v455 = vld [vmem:[%s342 + $0x30] sm:$0xff]
        %v456 = vld [vmem:[%s342 + $0x38] sm:$0xff]
        %v458 = vperm.slane %v448, 0
        %v459 = vperm.slane %v448, 1
        %v470 = vunpack.c.l.b16 %v449
        %v471 = vunpack.c.h.b16 %v449
        %v472 = vunpack.c.l.b16 %v450
        %v473 = vunpack.c.h.b16 %v450
        %v474 = vunpack.c.l.b16 %v451
        %v475 = vunpack.c.h.b16 %v451
        %v476 = vunpack.c.l.b16 %v452
        %v477 = vunpack.c.h.b16 %v452
        %v478 = vunpack.c.l.b16 %v453
        %v479 = vunpack.c.h.b16 %v453
        %v480 = vunpack.c.l.b16 %v454
        %v481 = vunpack.c.h.b16 %v454
        %v482 = vunpack.c.l.b16 %v455
        %v483 = vunpack.c.h.b16 %v455
        %v484 = vunpack.c.l.b16 %v456
        %v485 = vunpack.c.h.b16 %v456
        %v486 = vpack.c.b16 %v474, %v470
        %v487 = vpack.c.b16 %v475, %v471
        %v488 = vpack.c.b16 %v476, %v472
        %v489 = vpack.c.b16 %v477, %v473
        %v490 = vpack.c.b16 %v482, %v478
        %v491 = vpack.c.b16 %v483, %v479
        %v492 = vpack.c.b16 %v484, %v480
        %v493 = vpack.c.b16 %v485, %v481
        %v566 = vunpack.c.l.b16 %v384
        %v567 = vunpack.c.h.b16 %v384
        %v568 = vunpack.c.l.b16 %v385
        %v569 = vunpack.c.h.b16 %v385
        %v570 = vunpack.c.l.b16 %v386
        %v571 = vunpack.c.h.b16 %v386
        %v572 = vunpack.c.l.b16 %v387
        %v573 = vunpack.c.h.b16 %v387
        %v574 = vunpack.c.l.b16 %v388
        %v575 = vunpack.c.h.b16 %v388
        %v576 = vunpack.c.l.b16 %v389
        %v577 = vunpack.c.h.b16 %v389
        %v578 = vunpack.c.l.b16 %v390
        %v579 = vunpack.c.h.b16 %v390
        %v580 = vunpack.c.l.b16 %v391
        %v581 = vunpack.c.h.b16 %v391
        %v582 = vunpack.c.l.b16 %v392
        %v583 = vunpack.c.h.b16 %v392
        %v584 = vunpack.c.l.b16 %v393
        %v585 = vunpack.c.h.b16 %v393
        %v586 = vunpack.c.l.b16 %v394
        %v587 = vunpack.c.h.b16 %v394
        %v588 = vunpack.c.l.b16 %v395
        %v589 = vunpack.c.h.b16 %v395
        %v590 = vunpack.c.l.b16 %v396
        %v591 = vunpack.c.h.b16 %v396
        %v592 = vunpack.c.l.b16 %v397
        %v593 = vunpack.c.h.b16 %v397
        %v594 = vunpack.c.l.b16 %v398
        %v595 = vunpack.c.h.b16 %v398
        %v596 = vunpack.c.l.b16 %v399
        %v597 = vunpack.c.h.b16 %v399
        %v598 = vunpack.c.l.b16 %v400
        %v599 = vunpack.c.h.b16 %v400
        %v600 = vunpack.c.l.b16 %v401
        %v601 = vunpack.c.h.b16 %v401
        %v602 = vunpack.c.l.b16 %v402
        %v603 = vunpack.c.h.b16 %v402
        %v604 = vunpack.c.l.b16 %v403
        %v605 = vunpack.c.h.b16 %v403
        %v606 = vunpack.c.l.b16 %v404
        %v607 = vunpack.c.h.b16 %v404
        %v608 = vunpack.c.l.b16 %v405
        %v609 = vunpack.c.h.b16 %v405
        %v610 = vunpack.c.l.b16 %v406
        %v611 = vunpack.c.h.b16 %v406
        %v612 = vunpack.c.l.b16 %v407
        %v613 = vunpack.c.h.b16 %v407
        %v614 = vunpack.c.l.b16 %v408
        %v615 = vunpack.c.h.b16 %v408
        %v616 = vunpack.c.l.b16 %v409
        %v617 = vunpack.c.h.b16 %v409
        %v618 = vunpack.c.l.b16 %v410
        %v619 = vunpack.c.h.b16 %v410
        %v620 = vunpack.c.l.b16 %v411
        %v621 = vunpack.c.h.b16 %v411
        %v622 = vunpack.c.l.b16 %v412
        %v623 = vunpack.c.h.b16 %v412
        %v624 = vunpack.c.l.b16 %v413
        %v625 = vunpack.c.h.b16 %v413
        %v626 = vunpack.c.l.b16 %v414
        %v627 = vunpack.c.h.b16 %v414
        %v628 = vunpack.c.l.b16 %v415
        %v629 = vunpack.c.h.b16 %v415
        %v630 = vunpack.c.l.b16 %v416
        %v631 = vunpack.c.h.b16 %v416
        %v632 = vunpack.c.l.b16 %v417
        %v633 = vunpack.c.h.b16 %v417
        %v634 = vunpack.c.l.b16 %v418
        %v635 = vunpack.c.h.b16 %v418
        %v636 = vunpack.c.l.b16 %v419
        %v637 = vunpack.c.h.b16 %v419
        %v638 = vunpack.c.l.b16 %v420
        %v639 = vunpack.c.h.b16 %v420
        %v640 = vunpack.c.l.b16 %v421
        %v641 = vunpack.c.h.b16 %v421
        %v642 = vunpack.c.l.b16 %v422
        %v643 = vunpack.c.h.b16 %v422
        %v644 = vunpack.c.l.b16 %v423
        %v645 = vunpack.c.h.b16 %v423
        %v646 = vunpack.c.l.b16 %v424
        %v647 = vunpack.c.h.b16 %v424
        %v648 = vunpack.c.l.b16 %v425
        %v649 = vunpack.c.h.b16 %v425
        %v650 = vunpack.c.l.b16 %v426
        %v651 = vunpack.c.h.b16 %v426
        %v652 = vunpack.c.l.b16 %v427
        %v653 = vunpack.c.h.b16 %v427
        %v654 = vunpack.c.l.b16 %v428
        %v655 = vunpack.c.h.b16 %v428
        %v656 = vunpack.c.l.b16 %v429
        %v657 = vunpack.c.h.b16 %v429
        %v658 = vunpack.c.l.b16 %v430
        %v659 = vunpack.c.h.b16 %v430
        %v660 = vunpack.c.l.b16 %v431
        %v661 = vunpack.c.h.b16 %v431
        %v662 = vunpack.c.l.b16 %v432
        %v663 = vunpack.c.h.b16 %v432
        %v664 = vunpack.c.l.b16 %v433
        %v665 = vunpack.c.h.b16 %v433
        %v666 = vunpack.c.l.b16 %v434
        %v667 = vunpack.c.h.b16 %v434
        %v668 = vunpack.c.l.b16 %v435
        %v669 = vunpack.c.h.b16 %v435
        %v670 = vunpack.c.l.b16 %v436
        %v671 = vunpack.c.h.b16 %v436
        %v672 = vunpack.c.l.b16 %v437
        %v673 = vunpack.c.h.b16 %v437
        %v674 = vunpack.c.l.b16 %v438
        %v675 = vunpack.c.h.b16 %v438
        %v676 = vunpack.c.l.b16 %v439
        %v677 = vunpack.c.h.b16 %v439
        %v678 = vunpack.c.l.b16 %v440
        %v679 = vunpack.c.h.b16 %v440
        %v680 = vunpack.c.l.b16 %v441
        %v681 = vunpack.c.h.b16 %v441
        %v682 = vunpack.c.l.b16 %v442
        %v683 = vunpack.c.h.b16 %v442
        %v684 = vunpack.c.l.b16 %v443
        %v685 = vunpack.c.h.b16 %v443
        %v686 = vunpack.c.l.b16 %v444
        %v687 = vunpack.c.h.b16 %v444
        %v688 = vunpack.c.l.b16 %v445
        %v689 = vunpack.c.h.b16 %v445
        %v690 = vunpack.c.l.b16 %v446
        %v691 = vunpack.c.h.b16 %v446
        %v692 = vunpack.c.l.b16 %v447
        %v693 = vunpack.c.h.b16 %v447
        %v694 = vpack.c.b16 %v568, %v566
        %v695 = vpack.c.b16 %v569, %v567
        %v696 = vpack.c.b16 %v572, %v570
        %v697 = vpack.c.b16 %v573, %v571
        %v698 = vpack.c.b16 %v576, %v574
        %v699 = vpack.c.b16 %v577, %v575
        %v700 = vpack.c.b16 %v580, %v578
        %v701 = vpack.c.b16 %v581, %v579
        %v702 = vpack.c.b16 %v584, %v582
        %v703 = vpack.c.b16 %v585, %v583
        %v704 = vpack.c.b16 %v588, %v586
        %v705 = vpack.c.b16 %v589, %v587
        %v706 = vpack.c.b16 %v592, %v590
        %v707 = vpack.c.b16 %v593, %v591
        %v708 = vpack.c.b16 %v596, %v594
        %v709 = vpack.c.b16 %v597, %v595
        %v710 = vpack.c.b16 %v600, %v598
        %v711 = vpack.c.b16 %v601, %v599
        %v712 = vpack.c.b16 %v604, %v602
        %v713 = vpack.c.b16 %v605, %v603
        %v714 = vpack.c.b16 %v608, %v606
        %v715 = vpack.c.b16 %v609, %v607
        %v716 = vpack.c.b16 %v612, %v610
        %v717 = vpack.c.b16 %v613, %v611
        %v718 = vpack.c.b16 %v616, %v614
        %v719 = vpack.c.b16 %v617, %v615
        %v720 = vpack.c.b16 %v620, %v618
        %v721 = vpack.c.b16 %v621, %v619
        %v722 = vpack.c.b16 %v624, %v622
        %v723 = vpack.c.b16 %v625, %v623
        %v724 = vpack.c.b16 %v628, %v626
        %v725 = vpack.c.b16 %v629, %v627
        %v726 = vpack.c.b16 %v632, %v630
        %v727 = vpack.c.b16 %v633, %v631
        %v728 = vpack.c.b16 %v636, %v634
        %v729 = vpack.c.b16 %v637, %v635
        %v730 = vpack.c.b16 %v640, %v638
        %v731 = vpack.c.b16 %v641, %v639
        %v732 = vpack.c.b16 %v644, %v642
        %v733 = vpack.c.b16 %v645, %v643
        %v734 = vpack.c.b16 %v648, %v646
        %v735 = vpack.c.b16 %v649, %v647
        %v736 = vpack.c.b16 %v652, %v650
        %v737 = vpack.c.b16 %v653, %v651
        %v738 = vpack.c.b16 %v656, %v654
        %v739 = vpack.c.b16 %v657, %v655
        %v740 = vpack.c.b16 %v660, %v658
        %v741 = vpack.c.b16 %v661, %v659
        %v742 = vpack.c.b16 %v664, %v662
        %v743 = vpack.c.b16 %v665, %v663
        %v744 = vpack.c.b16 %v668, %v666
        %v745 = vpack.c.b16 %v669, %v667
        %v746 = vpack.c.b16 %v672, %v670
        %v747 = vpack.c.b16 %v673, %v671
        %v748 = vpack.c.b16 %v676, %v674
        %v749 = vpack.c.b16 %v677, %v675
        %v750 = vpack.c.b16 %v680, %v678
        %v751 = vpack.c.b16 %v681, %v679
        %v752 = vpack.c.b16 %v684, %v682
        %v753 = vpack.c.b16 %v685, %v683
        %v754 = vpack.c.b16 %v688, %v686
        %v755 = vpack.c.b16 %v689, %v687
        %v756 = vpack.c.b16 %v692, %v690
        %v757 = vpack.c.b16 %v693, %v691
        %822 = vmatpush.bf16.msra.mxu0 %v708
        %823 = vmatpush.bf16.msra.mxu0 %v706
        %824 = vmatpush.bf16.msra.mxu0 %v704
        %825 = vmatpush.bf16.msra.mxu0 %v702
        %826 = vmatpush.bf16.msra.mxu0 %v700
        %827 = vmatpush.bf16.msra.mxu0 %v698
        %828 = vmatpush.bf16.msra.mxu0 %v696
        %829 = vmatpush.bf16.msra.mxu0 %v694
        %830 = vmatmul.bf16.gmra.mxu0 %v486
        %v831 = vpop.f32.mrf.mxu0
        %v832 = vadd.f32 %v458, %v831
        %v833 = vpop.f32.mrf.mxu0
        %v834 = vadd.f32 %v458, %v833
        %835 = vmatmul.bf16.gmra.mxu0 %v490
        %v836 = vpop.f32.mrf.mxu0
        %v837 = vadd.f32 %v458, %v836
        %v838 = vpop.f32.mrf.mxu0
        %v839 = vadd.f32 %v458, %v838
        %840 = vdwg.mxu0
        %841 = vmatpush.bf16.msra.mxu0 %v724
        %842 = vmatpush.bf16.msra.mxu0 %v722
        %843 = vmatpush.bf16.msra.mxu0 %v720
        %844 = vmatpush.bf16.msra.mxu0 %v718
        %845 = vmatpush.bf16.msra.mxu0 %v716
        %846 = vmatpush.bf16.msra.mxu0 %v714
        %847 = vmatpush.bf16.msra.mxu0 %v712
        %848 = vmatpush.bf16.msra.mxu0 %v710
        %849 = vmatmul.bf16.gmra.mxu0 %v487
        %v850 = vpop.f32.mrf.mxu0
        %v851 = vadd.f32 %v832, %v850
        %v852 = vpop.f32.mrf.mxu0
        %v853 = vadd.f32 %v834, %v852
        %854 = vmatmul.bf16.gmra.mxu0 %v491
        %v855 = vpop.f32.mrf.mxu0
        %v856 = vadd.f32 %v837, %v855
        %v857 = vpop.f32.mrf.mxu0
        %v858 = vadd.f32 %v839, %v857
        %859 = vdwg.mxu0
        %860 = vmatpush.bf16.msra.mxu0 %v740
        %861 = vmatpush.bf16.msra.mxu0 %v738
        %862 = vmatpush.bf16.msra.mxu0 %v736
        %863 = vmatpush.bf16.msra.mxu0 %v734
        %864 = vmatpush.bf16.msra.mxu0 %v732
        %865 = vmatpush.bf16.msra.mxu0 %v730
        %866 = vmatpush.bf16.msra.mxu0 %v728
        %867 = vmatpush.bf16.msra.mxu0 %v726
        %868 = vmatmul.bf16.gmra.mxu0 %v488
        %v869 = vpop.f32.mrf.mxu0
        %v870 = vadd.f32 %v851, %v869
        %v871 = vpop.f32.mrf.mxu0
        %v872 = vadd.f32 %v853, %v871
        %873 = vmatmul.bf16.gmra.mxu0 %v492
        %v874 = vpop.f32.mrf.mxu0
        %v875 = vadd.f32 %v856, %v874
        %v876 = vpop.f32.mrf.mxu0
        %v877 = vadd.f32 %v858, %v876
        %878 = vdwg.mxu0
        %879 = vmatpush.bf16.msra.mxu0 %v756
        %880 = vmatpush.bf16.msra.mxu0 %v754
        %881 = vmatpush.bf16.msra.mxu0 %v752
        %882 = vmatpush.bf16.msra.mxu0 %v750
        %883 = vmatpush.bf16.msra.mxu0 %v748
        %884 = vmatpush.bf16.msra.mxu0 %v746
        %885 = vmatpush.bf16.msra.mxu0 %v744
        %886 = vmatpush.bf16.msra.mxu0 %v742
        %887 = vmatmul.bf16.gmra.mxu0 %v489
        %v888 = vpop.f32.mrf.mxu0
        %v889 = vadd.f32 %v870, %v888
        %v890 = vpop.f32.mrf.mxu0
        %v891 = vadd.f32 %v872, %v890
        %892 = vmatmul.bf16.gmra.mxu0 %v493
        %v893 = vpop.f32.mrf.mxu0
        %v894 = vadd.f32 %v875, %v893
        %v895 = vpop.f32.mrf.mxu0
        %v896 = vadd.f32 %v877, %v895
        %897 = vdwg.mxu0
        %898 = vmatpush.bf16.msra.mxu0 %v709
        %899 = vmatpush.bf16.msra.mxu0 %v707
        %900 = vmatpush.bf16.msra.mxu0 %v705
        %901 = vmatpush.bf16.msra.mxu0 %v703
        %902 = vmatpush.bf16.msra.mxu0 %v701
        %903 = vmatpush.bf16.msra.mxu0 %v699
        %904 = vmatpush.bf16.msra.mxu0 %v697
        %905 = vmatpush.bf16.msra.mxu0 %v695
        %906 = vmatmul.bf16.gmra.mxu0 %v486
        %v907 = vpop.f32.mrf.mxu0
        %v908 = vadd.f32 %v459, %v907
        %v909 = vpop.f32.mrf.mxu0
        %v910 = vadd.f32 %v459, %v909
        %911 = vmatmul.bf16.gmra.mxu0 %v490
        %v912 = vpop.f32.mrf.mxu0
        %v913 = vadd.f32 %v459, %v912
        %v914 = vpop.f32.mrf.mxu0
        %v915 = vadd.f32 %v459, %v914
        %916 = vdwg.mxu0
        %917 = vmatpush.bf16.msra.mxu0 %v725
        %918 = vmatpush.bf16.msra.mxu0 %v723
        %919 = vmatpush.bf16.msra.mxu0 %v721
        %920 = vmatpush.bf16.msra.mxu0 %v719
        %921 = vmatpush.bf16.msra.mxu0 %v717
        %922 = vmatpush.bf16.msra.mxu0 %v715
        %923 = vmatpush.bf16.msra.mxu0 %v713
        %924 = vmatpush.bf16.msra.mxu0 %v711
        %925 = vmatmul.bf16.gmra.mxu0 %v487
        %v926 = vpop.f32.mrf.mxu0
        %v927 = vadd.f32 %v908, %v926
        %v928 = vpop.f32.mrf.mxu0
        %v929 = vadd.f32 %v910, %v928
        %930 = vmatmul.bf16.gmra.mxu0 %v491
        %v931 = vpop.f32.mrf.mxu0
        %v932 = vadd.f32 %v913, %v931
        %v933 = vpop.f32.mrf.mxu0
        %v934 = vadd.f32 %v915, %v933
        %935 = vdwg.mxu0
        %936 = vmatpush.bf16.msra.mxu0 %v741
        %937 = vmatpush.bf16.msra.mxu0 %v739
        %938 = vmatpush.bf16.msra.mxu0 %v737
        %939 = vmatpush.bf16.msra.mxu0 %v735
        %940 = vmatpush.bf16.msra.mxu0 %v733
        %941 = vmatpush.bf16.msra.mxu0 %v731
        %942 = vmatpush.bf16.msra.mxu0 %v729
        %943 = vmatpush.bf16.msra.mxu0 %v727
        %944 = vmatmul.bf16.gmra.mxu0 %v488
        %v945 = vpop.f32.mrf.mxu0
        %v946 = vadd.f32 %v927, %v945
        %v947 = vpop.f32.mrf.mxu0
        %v948 = vadd.f32 %v929, %v947
        %949 = vmatmul.bf16.gmra.mxu0 %v492
        %v950 = vpop.f32.mrf.mxu0
        %v951 = vadd.f32 %v932, %v950
        %v952 = vpop.f32.mrf.mxu0
        %v953 = vadd.f32 %v934, %v952
        %954 = vdwg.mxu0
        %955 = vmatpush.bf16.msra.mxu0 %v757
        %956 = vmatpush.bf16.msra.mxu0 %v755
        %957 = vmatpush.bf16.msra.mxu0 %v753
        %958 = vmatpush.bf16.msra.mxu0 %v751
        %959 = vmatpush.bf16.msra.mxu0 %v749
        %960 = vmatpush.bf16.msra.mxu0 %v747
        %961 = vmatpush.bf16.msra.mxu0 %v745
        %962 = vmatpush.bf16.msra.mxu0 %v743
        %963 = vmatmul.bf16.gmra.mxu0 %v489
        %v964 = vpop.f32.mrf.mxu0
        %v965 = vadd.f32 %v946, %v964
        %v966 = vpop.f32.mrf.mxu0
        %v967 = vadd.f32 %v948, %v966
        %968 = vmatmul.bf16.gmra.mxu0 %v493
        %v969 = vpop.f32.mrf.mxu0
        %v970 = vadd.f32 %v951, %v969
        %v971 = vpop.f32.mrf.mxu0
        %v972 = vadd.f32 %v953, %v971
        %973 = vdwg.mxu0
        %v974 = vld [vmem:[%s354] sm:$0xff]
        %v975 = vld [vmem:[%s354 + $0x8] sm:$0xff]
        %v976 = vld [vmem:[%s354 + $0x10] sm:$0xff]
        %v977 = vld [vmem:[%s354 + $0x18] sm:$0xff]
        %v978 = vld [vmem:[%s354 + $0x20] sm:$0xff]
        %v979 = vld [vmem:[%s354 + $0x28] sm:$0xff]
        %v980 = vld [vmem:[%s354 + $0x30] sm:$0xff]
        %v981 = vld [vmem:[%s354 + $0x38] sm:$0xff]
        %v990 = vunpack.c.l.b16 %v974
        %v991 = vunpack.c.h.b16 %v974
        %v992 = vunpack.c.l.b16 %v975
        %v993 = vunpack.c.h.b16 %v975
        %v994 = vunpack.c.l.b16 %v976
        %v995 = vunpack.c.h.b16 %v976
        %v996 = vunpack.c.l.b16 %v977
        %v997 = vunpack.c.h.b16 %v977
        %v998 = vunpack.c.l.b16 %v978
        %v999 = vunpack.c.h.b16 %v978
        %v1000 = vunpack.c.l.b16 %v979
        %v1001 = vunpack.c.h.b16 %v979
        %v1002 = vunpack.c.l.b16 %v980
        %v1003 = vunpack.c.h.b16 %v980
        %v1004 = vunpack.c.l.b16 %v981
        %v1005 = vunpack.c.h.b16 %v981
        %v1006 = vpack.c.b16 %v994, %v990
        %v1007 = vpack.c.b16 %v995, %v991
        %v1008 = vpack.c.b16 %v996, %v992
        %v1009 = vpack.c.b16 %v997, %v993
        %v1010 = vpack.c.b16 %v1002, %v998
        %v1011 = vpack.c.b16 %v1003, %v999
        %v1012 = vpack.c.b16 %v1004, %v1000
        %v1013 = vpack.c.b16 %v1005, %v1001
        %1022 = vmatpush.bf16.msra.mxu0 %v708
        %1023 = vmatpush.bf16.msra.mxu0 %v706
        %1024 = vmatpush.bf16.msra.mxu0 %v704
        %1025 = vmatpush.bf16.msra.mxu0 %v702
        %1026 = vmatpush.bf16.msra.mxu0 %v700
        %1027 = vmatpush.bf16.msra.mxu0 %v698
        %1028 = vmatpush.bf16.msra.mxu0 %v696
        %1029 = vmatpush.bf16.msra.mxu0 %v694
        %1030 = vmatmul.bf16.gmra.mxu0 %v1006
        %v1031 = vpop.f32.mrf.mxu0
        %v1032 = vadd.f32 %v458, %v1031
        %v1033 = vpop.f32.mrf.mxu0
        %v1034 = vadd.f32 %v458, %v1033
        %1035 = vmatmul.bf16.gmra.mxu0 %v1010
        %v1036 = vpop.f32.mrf.mxu0
        %v1037 = vadd.f32 %v458, %v1036
        %v1038 = vpop.f32.mrf.mxu0
        %v1039 = vadd.f32 %v458, %v1038
        %1040 = vdwg.mxu0
        %1041 = vmatpush.bf16.msra.mxu0 %v724
        %1042 = vmatpush.bf16.msra.mxu0 %v722
        %1043 = vmatpush.bf16.msra.mxu0 %v720
        %1044 = vmatpush.bf16.msra.mxu0 %v718
        %1045 = vmatpush.bf16.msra.mxu0 %v716
        %1046 = vmatpush.bf16.msra.mxu0 %v714
        %1047 = vmatpush.bf16.msra.mxu0 %v712
        %1048 = vmatpush.bf16.msra.mxu0 %v710
        %1049 = vmatmul.bf16.gmra.mxu0 %v1007
        %v1050 = vpop.f32.mrf.mxu0
        %v1051 = vadd.f32 %v1032, %v1050
        %v1052 = vpop.f32.mrf.mxu0
        %v1053 = vadd.f32 %v1034, %v1052
        %1054 = vmatmul.bf16.gmra.mxu0 %v1011
        %v1055 = vpop.f32.mrf.mxu0
        %v1056 = vadd.f32 %v1037, %v1055
        %v1057 = vpop.f32.mrf.mxu0
        %v1058 = vadd.f32 %v1039, %v1057
        %1059 = vdwg.mxu0
        %1060 = vmatpush.bf16.msra.mxu0 %v740
        %1061 = vmatpush.bf16.msra.mxu0 %v738
        %1062 = vmatpush.bf16.msra.mxu0 %v736
        %1063 = vmatpush.bf16.msra.mxu0 %v734
        %1064 = vmatpush.bf16.msra.mxu0 %v732
        %1065 = vmatpush.bf16.msra.mxu0 %v730
        %1066 = vmatpush.bf16.msra.mxu0 %v728
        %1067 = vmatpush.bf16.msra.mxu0 %v726
        %1068 = vmatmul.bf16.gmra.mxu0 %v1008
        %v1069 = vpop.f32.mrf.mxu0
        %v1070 = vadd.f32 %v1051, %v1069
        %v1071 = vpop.f32.mrf.mxu0
        %v1072 = vadd.f32 %v1053, %v1071
        %1073 = vmatmul.bf16.gmra.mxu0 %v1012
        %v1074 = vpop.f32.mrf.mxu0
        %v1075 = vadd.f32 %v1056, %v1074
        %v1076 = vpop.f32.mrf.mxu0
        %v1077 = vadd.f32 %v1058, %v1076
        %1078 = vdwg.mxu0
        %1079 = vmatpush.bf16.msra.mxu0 %v756
        %1080 = vmatpush.bf16.msra.mxu0 %v754
        %1081 = vmatpush.bf16.msra.mxu0 %v752
        %1082 = vmatpush.bf16.msra.mxu0 %v750
        %1083 = vmatpush.bf16.msra.mxu0 %v748
        %1084 = vmatpush.bf16.msra.mxu0 %v746
        %1085 = vmatpush.bf16.msra.mxu0 %v744
        %1086 = vmatpush.bf16.msra.mxu0 %v742
        %1087 = vmatmul.bf16.gmra.mxu0 %v1009
        %v1088 = vpop.f32.mrf.mxu0
        %v1089 = vadd.f32 %v1070, %v1088
        %v1090 = vpop.f32.mrf.mxu0
        %v1091 = vadd.f32 %v1072, %v1090
        %1092 = vmatmul.bf16.gmra.mxu0 %v1013
        %v1093 = vpop.f32.mrf.mxu0
        %v1094 = vadd.f32 %v1075, %v1093
        %v1095 = vpop.f32.mrf.mxu0
        %v1096 = vadd.f32 %v1077, %v1095
        %1097 = vdwg.mxu0
        %1098 = vmatpush.bf16.msra.mxu0 %v709
        %1099 = vmatpush.bf16.msra.mxu0 %v707
        %1100 = vmatpush.bf16.msra.mxu0 %v705
        %1101 = vmatpush.bf16.msra.mxu0 %v703
        %1102 = vmatpush.bf16.msra.mxu0 %v701
        %1103 = vmatpush.bf16.msra.mxu0 %v699
        %1104 = vmatpush.bf16.msra.mxu0 %v697
        %1105 = vmatpush.bf16.msra.mxu0 %v695
        %1106 = vmatmul.bf16.gmra.mxu0 %v1006
        %v1107 = vpop.f32.mrf.mxu0
        %v1108 = vadd.f32 %v459, %v1107
        %v1109 = vpop.f32.mrf.mxu0
        %v1110 = vadd.f32 %v459, %v1109
        %1111 = vmatmul.bf16.gmra.mxu0 %v1010
        %v1112 = vpop.f32.mrf.mxu0
        %v1113 = vadd.f32 %v459, %v1112
        %v1114 = vpop.f32.mrf.mxu0
        %v1115 = vadd.f32 %v459, %v1114
        %1116 = vdwg.mxu0
        %1117 = vmatpush.bf16.msra.mxu0 %v725
        %1118 = vmatpush.bf16.msra.mxu0 %v723
        %1119 = vmatpush.bf16.msra.mxu0 %v721
        %1120 = vmatpush.bf16.msra.mxu0 %v719
        %1121 = vmatpush.bf16.msra.mxu0 %v717
        %1122 = vmatpush.bf16.msra.mxu0 %v715
        %1123 = vmatpush.bf16.msra.mxu0 %v713
        %1124 = vmatpush.bf16.msra.mxu0 %v711
        %1125 = vmatmul.bf16.gmra.mxu0 %v1007
        %v1126 = vpop.f32.mrf.mxu0
        %v1127 = vadd.f32 %v1108, %v1126
        %v1128 = vpop.f32.mrf.mxu0
        %v1129 = vadd.f32 %v1110, %v1128
        %1130 = vmatmul.bf16.gmra.mxu0 %v1011
        %v1131 = vpop.f32.mrf.mxu0
        %v1132 = vadd.f32 %v1113, %v1131
        %v1133 = vpop.f32.mrf.mxu0
        %v1134 = vadd.f32 %v1115, %v1133
        %1135 = vdwg.mxu0
        %1136 = vmatpush.bf16.msra.mxu0 %v741
        %1137 = vmatpush.bf16.msra.mxu0 %v739
        %1138 = vmatpush.bf16.msra.mxu0 %v737
        %1139 = vmatpush.bf16.msra.mxu0 %v735
        %1140 = vmatpush.bf16.msra.mxu0 %v733
        %1141 = vmatpush.bf16.msra.mxu0 %v731
        %1142 = vmatpush.bf16.msra.mxu0 %v729
        %1143 = vmatpush.bf16.msra.mxu0 %v727
        %1144 = vmatmul.bf16.gmra.mxu0 %v1008
        %v1145 = vpop.f32.mrf.mxu0
        %v1146 = vadd.f32 %v1127, %v1145
        %v1147 = vpop.f32.mrf.mxu0
        %v1148 = vadd.f32 %v1129, %v1147
        %1149 = vmatmul.bf16.gmra.mxu0 %v1012
        %v1150 = vpop.f32.mrf.mxu0
        %v1151 = vadd.f32 %v1132, %v1150
        %v1152 = vpop.f32.mrf.mxu0
        %v1153 = vadd.f32 %v1134, %v1152
        %1154 = vdwg.mxu0
        %1155 = vmatpush.bf16.msra.mxu0 %v757
        %1156 = vmatpush.bf16.msra.mxu0 %v755
        %1157 = vmatpush.bf16.msra.mxu0 %v753
        %1158 = vmatpush.bf16.msra.mxu0 %v751
        %1159 = vmatpush.bf16.msra.mxu0 %v749
        %1160 = vmatpush.bf16.msra.mxu0 %v747
        %1161 = vmatpush.bf16.msra.mxu0 %v745
        %1162 = vmatpush.bf16.msra.mxu0 %v743
        %1163 = vmatmul.bf16.gmra.mxu0 %v1009
        %v1164 = vpop.f32.mrf.mxu0
        %v1165 = vadd.f32 %v1146, %v1164
        %v1166 = vpop.f32.mrf.mxu0
        %v1167 = vadd.f32 %v1148, %v1166
        %1168 = vmatmul.bf16.gmra.mxu0 %v1013
        %v1169 = vpop.f32.mrf.mxu0
        %v1170 = vadd.f32 %v1151, %v1169
        %v1171 = vpop.f32.mrf.mxu0
        %v1172 = vadd.f32 %v1153, %v1171
        %1173 = vdwg.mxu0
        %v1174 = vpack.c.bf16 %v965, %v889
        %v1175 = vpack.c.bf16 %v967, %v891
        %v1176 = vpack.c.bf16 %v970, %v894
        %v1177 = vpack.c.bf16 %v972, %v896
        %v1178 = vpack.c.bf16 %v1165, %v1089
        %v1179 = vpack.c.bf16 %v1167, %v1091
        %v1180 = vpack.c.bf16 %v1170, %v1094
        %v1181 = vpack.c.bf16 %v1172, %v1096
        %v1184 = vunpack.c.l.b16 %v1178
        %v1185 = vunpack.c.h.b16 %v1178
        %v1186 = vunpack.c.l.b16 %v1179
        %v1187 = vunpack.c.h.b16 %v1179
        %v1188 = vpack.c.b16 %v1186, %v1184
        %v1189 = vpack.c.b16 %v1187, %v1185
        %v1194 = vunpack.c.l.b16 %v1174
        %v1195 = vunpack.c.h.b16 %v1174
        %v1196 = vunpack.c.l.b16 %v1175
        %v1197 = vunpack.c.h.b16 %v1175
        %v1198 = vpack.c.b16 %v1196, %v1194
        %v1199 = vpack.c.b16 %v1197, %v1195
        %1202 = vmatpush.bf16.xpose.msra.mxu0 0
        %1203 = vmatpush.bf16.xpose.msra.mxu0 0
        %1204 = vmatpush.bf16.xpose.msra.mxu0 0
        %1205 = vmatpush.bf16.xpose.msra.mxu0 0
        %1206 = vmatpush.bf16.xpose.msra.mxu0 0
        %1207 = vmatpush.bf16.xpose.msra.mxu0 0
        %1208 = vmatpush.bf16.xpose.msra.mxu0 0
        %1209 = vmatpush.bf16.xpose.msra.mxu0 %v1198
        %1210 = vmatmul.bf16.gmra.mxu0 %v1188
        %v1211 = vpop.f32.mrf.mxu0
        %v1212 = vadd.f32 0.0, %v1211
        %v1213 = vpop.f32.mrf.mxu0
        %v1214 = vadd.f32 0.0, %v1213
        %1215 = vdwg.mxu0
        %1216 = vmatpush.bf16.xpose.msra.mxu0 0
        %1217 = vmatpush.bf16.xpose.msra.mxu0 0
        %1218 = vmatpush.bf16.xpose.msra.mxu0 0
        %1219 = vmatpush.bf16.xpose.msra.mxu0 0
        %1220 = vmatpush.bf16.xpose.msra.mxu0 0
        %1221 = vmatpush.bf16.xpose.msra.mxu0 0
        %1222 = vmatpush.bf16.xpose.msra.mxu0 0
        %1223 = vmatpush.bf16.xpose.msra.mxu0 %v1199
        %1224 = vmatmul.bf16.gmra.mxu0 %v1189
        %v1225 = vpop.f32.mrf.mxu0
        %v1226 = vadd.f32 %v1212, %v1225
        %v1227 = vpop.f32.mrf.mxu0
        %v1228 = vadd.f32 %v1214, %v1227
        %1229 = vdwg.mxu0
        %v1232 = vunpack.c.l.b16 %v1180
        %v1233 = vunpack.c.h.b16 %v1180
        %v1234 = vunpack.c.l.b16 %v1181
        %v1235 = vunpack.c.h.b16 %v1181
        %v1236 = vpack.c.b16 %v1234, %v1232
        %v1237 = vpack.c.b16 %v1235, %v1233
        %v1242 = vunpack.c.l.b16 %v1176
        %v1243 = vunpack.c.h.b16 %v1176
        %v1244 = vunpack.c.l.b16 %v1177
        %v1245 = vunpack.c.h.b16 %v1177
        %v1246 = vpack.c.b16 %v1244, %v1242
        %v1247 = vpack.c.b16 %v1245, %v1243
        %1250 = vmatpush.bf16.xpose.msra.mxu0 0
        %1251 = vmatpush.bf16.xpose.msra.mxu0 0
        %1252 = vmatpush.bf16.xpose.msra.mxu0 0
        %1253 = vmatpush.bf16.xpose.msra.mxu0 0
        %1254 = vmatpush.bf16.xpose.msra.mxu0 0
        %1255 = vmatpush.bf16.xpose.msra.mxu0 0
        %1256 = vmatpush.bf16.xpose.msra.mxu0 0
        %1257 = vmatpush.bf16.xpose.msra.mxu0 %v1246
        %1258 = vmatmul.bf16.gmra.mxu0 %v1236
        %v1259 = vpop.f32.mrf.mxu0
        %v1260 = vadd.f32 0.0, %v1259
        %v1261 = vpop.f32.mrf.mxu0
        %v1262 = vadd.f32 0.0, %v1261
        %1263 = vdwg.mxu0
        %1264 = vmatpush.bf16.xpose.msra.mxu0 0
        %1265 = vmatpush.bf16.xpose.msra.mxu0 0
        %1266 = vmatpush.bf16.xpose.msra.mxu0 0
        %1267 = vmatpush.bf16.xpose.msra.mxu0 0
        %1268 = vmatpush.bf16.xpose.msra.mxu0 0
        %1269 = vmatpush.bf16.xpose.msra.mxu0 0
        %1270 = vmatpush.bf16.xpose.msra.mxu0 0
        %1271 = vmatpush.bf16.xpose.msra.mxu0 %v1247
        %1272 = vmatmul.bf16.gmra.mxu0 %v1237
        %v1273 = vpop.f32.mrf.mxu0
        %v1274 = vadd.f32 %v1260, %v1273
        %v1275 = vpop.f32.mrf.mxu0
        %v1276 = vadd.f32 %v1262, %v1275
        %1277 = vdwg.mxu0
        %vm1278 = vcmask 130048
        %v1279 = vsel %vm1278, %v1226, -inf
        %1280 = vmax.xlane.f32.xlu0 %v1279
        %v1281 = vpop.xlane.xlu0 %1280
        %v1282 = vsel %vm1278, %v1228, -inf
        %1283 = vmax.xlane.f32.xlu0 %v1282
        %v1284 = vpop.xlane.xlu0 %1283
        %v1285 = vsel %vm1278, %v1274, -inf
        %1286 = vmax.xlane.f32.xlu0 %v1285
        %v1287 = vpop.xlane.xlu0 %1286
        %v1288 = vsel %vm1278, %v1276, -inf
        %1289 = vmax.xlane.f32.xlu0 %v1288
        %v1290 = vpop.xlane.xlu0 %1289
        %v1291 = vsub.f32 %v1226, %v1281
        %v1292 = vsub.f32 %v1228, %v1284
        %v1293 = vsub.f32 %v1274, %v1287
        %v1294 = vsub.f32 %v1276, %v1290
        %v1295 = vmul.f32 %v1291, 1.442695
        %v1296 = vpow.pop %v1295
        %v1297 = vmul.f32 %v1292, 1.442695
        %v1298 = vpow.pop %v1297
        %v1299 = vmul.f32 %v1293, 1.442695
        %v1300 = vpow.pop %v1299
        %v1301 = vmul.f32 %v1294, 1.442695
        %v1302 = vpow.pop %v1301
        %v1303 = vsel %vm1278, %v1296, 0.0
        %1304 = vadd.xlane.f32.xlu0 %v1303
        %v1305 = vpop.xlane.xlu0 %1304
        %v1306 = vsel %vm1278, %v1298, 0.0
        %1307 = vadd.xlane.f32.xlu0 %v1306
        %v1308 = vpop.xlane.xlu0 %1307
        %v1309 = vsel %vm1278, %v1300, 0.0
        %1310 = vadd.xlane.f32.xlu0 %v1309
        %v1311 = vpop.xlane.xlu0 %1310
        %v1312 = vsel %vm1278, %v1302, 0.0
        %1313 = vadd.xlane.f32.xlu0 %v1312
        %v1314 = vpop.xlane.xlu0 %1313
        %v1315 = vrcp.pop %v1305
        %v1316 = vmul.f32 %v1305, %v1315
        %v1317 = vsub.f32 1.0, %v1316
        %v1318 = vmul.f32 %v1315, %v1317
        %v1319 = vadd.f32 %v1315, %v1318
        %vm1320 = vweird.f32 %v1305
        %vm1321 = vweird.f32 %v1315
        %vm1322 = vmor %vm1320, %vm1321
        %v1323 = vsel %vm1322, %v1315, %v1319
        %v1324 = vand.u32 2147483647, %v1305
        %vm1325 = vcmp.eq.f32.partialorder %v1324, 8.507059e+37
        %v1326 = vand.u32 %v1305, 2147483648
        %v1327 = vor.u32 1.1754944e-38, %v1326
        %v1328 = vsel %vm1325, %v1327, %v1323
        %v1329 = vrcp.pop %v1308
        %v1330 = vmul.f32 %v1308, %v1329
        %v1331 = vsub.f32 1.0, %v1330
        %v1332 = vmul.f32 %v1329, %v1331
        %v1333 = vadd.f32 %v1329, %v1332
        %vm1334 = vweird.f32 %v1308
        %vm1335 = vweird.f32 %v1329
        %vm1336 = vmor %vm1334, %vm1335
        %v1337 = vsel %vm1336, %v1329, %v1333
        %v1338 = vand.u32 2147483647, %v1308
        %vm1339 = vcmp.eq.f32.partialorder %v1338, 8.507059e+37
        %v1340 = vand.u32 %v1308, 2147483648
        %v1341 = vor.u32 1.1754944e-38, %v1340
        %v1342 = vsel %vm1339, %v1341, %v1337
        %v1343 = vrcp.pop %v1311
        %v1344 = vmul.f32 %v1311, %v1343
        %v1345 = vsub.f32 1.0, %v1344
        %v1346 = vmul.f32 %v1343, %v1345
        %v1347 = vadd.f32 %v1343, %v1346
        %vm1348 = vweird.f32 %v1311
        %vm1349 = vweird.f32 %v1343
        %vm1350 = vmor %vm1348, %vm1349
        %v1351 = vsel %vm1350, %v1343, %v1347
        %v1352 = vand.u32 2147483647, %v1311
        %vm1353 = vcmp.eq.f32.partialorder %v1352, 8.507059e+37
        %v1354 = vand.u32 %v1311, 2147483648
        %v1355 = vor.u32 1.1754944e-38, %v1354
        %v1356 = vsel %vm1353, %v1355, %v1351
        %v1357 = vrcp.pop %v1314
        %v1358 = vmul.f32 %v1314, %v1357
        %v1359 = vsub.f32 1.0, %v1358
        %v1360 = vmul.f32 %v1357, %v1359
        %v1361 = vadd.f32 %v1357, %v1360
        %vm1362 = vweird.f32 %v1314
        %vm1363 = vweird.f32 %v1357
        %vm1364 = vmor %vm1362, %vm1363
        %v1365 = vsel %vm1364, %v1357, %v1361
        %v1366 = vand.u32 2147483647, %v1314
        %vm1367 = vcmp.eq.f32.partialorder %v1366, 8.507059e+37
        %v1368 = vand.u32 %v1314, 2147483648
        %v1369 = vor.u32 1.1754944e-38, %v1368
        %v1370 = vsel %vm1367, %v1369, %v1365
        %v1371 = vmul.f32 %v1296, %v1328
        %v1372 = vmul.f32 %v1298, %v1342
        %v1373 = vmul.f32 %v1300, %v1356
        %v1374 = vmul.f32 %v1302, %v1370
        %1375 = vst.msk [vmem:[%s324] sm:$0xff] %vm1278, %v1371
        %1376 = vst.msk [vmem:[%s324 + $0x8] sm:$0xff] %vm1278, %v1372
        %1377 = vst.msk [vmem:[%s324 + $0x10] sm:$0xff] %vm1278, %v1373
        %1378 = vst.msk [vmem:[%s324 + $0x18] sm:$0xff] %vm1278, %v1374
        %v1379 = vmul.f32 %v1089, %v1089
        %v1380 = vmul.f32 %v1165, %v1165
        %v1381 = vmul.f32 %v1091, %v1091
        %v1382 = vmul.f32 %v1167, %v1167
        %v1383 = vmul.f32 %v1094, %v1094
        %v1384 = vmul.f32 %v1170, %v1170
        %v1385 = vmul.f32 %v1096, %v1096
        %v1386 = vmul.f32 %v1172, %v1172
        %v1387 = vadd.f32 %v1379, %v1380
        %1388 = vadd.xlane.f32.xlu0 %v1387
        %v1389 = vpop.xlane.xlu0 %1388
        %v1390 = vadd.f32 %v1381, %v1382
        %1391 = vadd.xlane.f32.xlu0 %v1390
        %v1392 = vpop.xlane.xlu0 %1391
        %v1393 = vadd.f32 %v1383, %v1384
        %1394 = vadd.xlane.f32.xlu0 %v1393
        %v1395 = vpop.xlane.xlu0 %1394
        %v1396 = vadd.f32 %v1385, %v1386
        %1397 = vadd.xlane.f32.xlu0 %v1396
        %v1398 = vpop.xlane.xlu0 %1397
        %v1399 = vmul.f32 %v889, %v889
        %v1400 = vmul.f32 %v965, %v965
        %v1401 = vmul.f32 %v891, %v891
        %v1402 = vmul.f32 %v967, %v967
        %v1403 = vmul.f32 %v894, %v894
        %v1404 = vmul.f32 %v970, %v970
        %v1405 = vmul.f32 %v896, %v896
        %v1406 = vmul.f32 %v972, %v972
        %v1407 = vadd.f32 %v1399, %v1400
        %1408 = vadd.xlane.f32.xlu0 %v1407
        %v1409 = vpop.xlane.xlu0 %1408
        %v1410 = vadd.f32 %v1401, %v1402
        %1411 = vadd.xlane.f32.xlu0 %v1410
        %v1412 = vpop.xlane.xlu0 %1411
        %v1413 = vadd.f32 %v1403, %v1404
        %1414 = vadd.xlane.f32.xlu0 %v1413
        %v1415 = vpop.xlane.xlu0 %1414
        %v1416 = vadd.f32 %v1405, %v1406
        %1417 = vadd.xlane.f32.xlu0 %v1416
        %v1418 = vpop.xlane.xlu0 %1417
        %v1419 = vmax.f32 %v1389, 1e-24
        %v1420 = vmax.f32 %v1392, 1e-24
        %v1421 = vmax.f32 %v1395, 1e-24
        %v1422 = vmax.f32 %v1398, 1e-24
        %v1423 = vrsqrt.pop %v1419
        %v1424 = vmul.f32 %v1423, %v1419
        %v1425 = vmul.f32 %v1424, %v1423
        %v1426 = vmul.f32 0.5, %v1425
        %v1427 = vsub.f32 1.5, %v1426
        %v1428 = vmul.f32 %v1423, %v1427
        %vm1429 = vweird.f32 %v1419
        %vm1430 = vweird.f32 %v1423
        %vm1431 = vmor %vm1429, %vm1430
        %v1432 = vsel %vm1431, %v1423, %v1428
        %v1433 = vrsqrt.pop %v1420
        %v1434 = vmul.f32 %v1433, %v1420
        %v1435 = vmul.f32 %v1434, %v1433
        %v1436 = vmul.f32 0.5, %v1435
        %v1437 = vsub.f32 1.5, %v1436
        %v1438 = vmul.f32 %v1433, %v1437
        %vm1439 = vweird.f32 %v1420
        %vm1440 = vweird.f32 %v1433
        %vm1441 = vmor %vm1439, %vm1440
        %v1442 = vsel %vm1441, %v1433, %v1438
        %v1443 = vrsqrt.pop %v1421
        %v1444 = vmul.f32 %v1443, %v1421
        %v1445 = vmul.f32 %v1444, %v1443
        %v1446 = vmul.f32 0.5, %v1445
        %v1447 = vsub.f32 1.5, %v1446
        %v1448 = vmul.f32 %v1443, %v1447
        %vm1449 = vweird.f32 %v1421
        %vm1450 = vweird.f32 %v1443
        %vm1451 = vmor %vm1449, %vm1450
        %v1452 = vsel %vm1451, %v1443, %v1448
        %v1453 = vrsqrt.pop %v1422
        %v1454 = vmul.f32 %v1453, %v1422
        %v1455 = vmul.f32 %v1454, %v1453
        %v1456 = vmul.f32 0.5, %v1455
        %v1457 = vsub.f32 1.5, %v1456
        %v1458 = vmul.f32 %v1453, %v1457
        %vm1459 = vweird.f32 %v1422
        %vm1460 = vweird.f32 %v1453
        %vm1461 = vmor %vm1459, %vm1460
        %v1462 = vsel %vm1461, %v1453, %v1458
        %v1463 = vmax.f32 %v1409, 1e-24
        %v1464 = vmax.f32 %v1412, 1e-24
        %v1465 = vmax.f32 %v1415, 1e-24
        %v1466 = vmax.f32 %v1418, 1e-24
        %v1467 = vrsqrt.pop %v1463
        %v1468 = vmul.f32 %v1467, %v1463
        %v1469 = vmul.f32 %v1468, %v1467
        %v1470 = vmul.f32 0.5, %v1469
        %v1471 = vsub.f32 1.5, %v1470
        %v1472 = vmul.f32 %v1467, %v1471
        %vm1473 = vweird.f32 %v1463
        %vm1474 = vweird.f32 %v1467
        %vm1475 = vmor %vm1473, %vm1474
        %v1476 = vsel %vm1475, %v1467, %v1472
        %v1477 = vrsqrt.pop %v1464
        %v1478 = vmul.f32 %v1477, %v1464
        %v1479 = vmul.f32 %v1478, %v1477
        %v1480 = vmul.f32 0.5, %v1479
        %v1481 = vsub.f32 1.5, %v1480
        %v1482 = vmul.f32 %v1477, %v1481
        %vm1483 = vweird.f32 %v1464
        %vm1484 = vweird.f32 %v1477
        %vm1485 = vmor %vm1483, %vm1484
        %v1486 = vsel %vm1485, %v1477, %v1482
        %v1487 = vrsqrt.pop %v1465
        %v1488 = vmul.f32 %v1487, %v1465
        %v1489 = vmul.f32 %v1488, %v1487
        %v1490 = vmul.f32 0.5, %v1489
        %v1491 = vsub.f32 1.5, %v1490
        %v1492 = vmul.f32 %v1487, %v1491
        %vm1493 = vweird.f32 %v1465
        %vm1494 = vweird.f32 %v1487
        %vm1495 = vmor %vm1493, %vm1494
        %v1496 = vsel %vm1495, %v1487, %v1492
        %v1497 = vrsqrt.pop %v1466
        %v1498 = vmul.f32 %v1497, %v1466
        %v1499 = vmul.f32 %v1498, %v1497
        %v1500 = vmul.f32 0.5, %v1499
        %v1501 = vsub.f32 1.5, %v1500
        %v1502 = vmul.f32 %v1497, %v1501
        %vm1503 = vweird.f32 %v1466
        %vm1504 = vweird.f32 %v1497
        %vm1505 = vmor %vm1503, %vm1504
        %v1506 = vsel %vm1505, %v1497, %v1502
        %v1507 = vmul.f32 %v1226, %v1432
        %v1508 = vmul.f32 %v1228, %v1442
        %v1509 = vmul.f32 %v1274, %v1452
        %v1510 = vmul.f32 %v1276, %v1462
        %v1515 = vlaneseq
        %v1516 = vand.u32 %v1515, 127
        %v1517 = vperm.slane %v1476, %v1516
        %v1518 = vadd.s32 %v1516, 4294967288
        %v1519 = vperm.slane %v1486, %v1518
        %vm1520 = vcmask 130112
        %v1521 = vsel %vm1520, %v1519, %v1517
        %v1522 = vperm.slane %v1496, %v1516
        %v1523 = vperm.slane %v1506, %v1518
        %v1524 = vsel %vm1520, %v1523, %v1522
        %vm1525 = vcmask 1042434
        %v1526 = vsel %vm1525, %v1521, %v1521
        %vm1527 = vcmask 1043459
        %v1528 = vsel %vm1527, %v1521, %v1526
        %vm1529 = vcmask 1044484
        %v1530 = vsel %vm1529, %v1521, %v1528
        %vm1531 = vcmask 1045509
        %v1532 = vsel %vm1531, %v1521, %v1530
        %vm1533 = vcmask 1046534
        %v1534 = vsel %vm1533, %v1521, %v1532
        %vm1535 = vcmask 1047559
        %v1536 = vsel %vm1535, %v1521, %v1534
        %v1537 = vsel %vm1525, %v1524, %v1524
        %v1538 = vsel %vm1527, %v1524, %v1537
        %v1539 = vsel %vm1529, %v1524, %v1538
        %v1540 = vsel %vm1531, %v1524, %v1539
        %v1541 = vsel %vm1533, %v1524, %v1540
        %v1542 = vsel %vm1535, %v1524, %v1541
        %v1545 = vmul.f32 %v1507, %v1536
        %v1546 = vmul.f32 %v1508, %v1536
        %v1547 = vmul.f32 %v1509, %v1542
        %v1548 = vmul.f32 %v1510, %v1542
        %v1549 = vld [vmem:[%s366] sm:$0xf]
        %v1550 = vld [vmem:[%s366 + $0x4] sm:$0xf]
        %v1551 = vld [vmem:[%s366 + $0x8] sm:$0xf]
        %v1552 = vld [vmem:[%s366 + $0xc] sm:$0xf]
        %v1553 = vunpack.c.l.bf16 %v1549
        %v1554 = vunpack.c.l.bf16 %v1550
        %v1555 = vunpack.c.l.bf16 %v1551
        %v1556 = vunpack.c.l.bf16 %v1552
        %v1557 = vadd.f32 %v1545, %v1553
        %v1558 = vadd.f32 %v1546, %v1554
        %v1559 = vadd.f32 %v1547, %v1555
        %v1560 = vadd.f32 %v1548, %v1556
        %v1565 = vshra.s32 %v1557, 31
        %v1566 = vshra.s32 %v1558, 31
        %v1567 = vshra.s32 %v1559, 31
        %v1568 = vshra.s32 %v1560, 31
        %v1569 = vand.u32 %v1565, 2147483647
        %v1570 = vand.u32 %v1566, 2147483647
        %v1571 = vand.u32 %v1567, 2147483647
        %v1572 = vand.u32 %v1568, 2147483647
        %v1573 = vxor.u32 %v1557, %v1569
        %v1574 = vxor.u32 %v1558, %v1570
        %v1575 = vxor.u32 %v1559, %v1571
        %v1576 = vxor.u32 %v1560, %v1572
        %v1577 = vand.u32 %v1573, 4294967280
        %v1578 = vand.u32 %v1574, 4294967280
        %v1579 = vand.u32 %v1575, 4294967280
        %v1580 = vand.u32 %v1576, 4294967280
        %v1581 = vsub.s32 15, %v1516
        %v1582 = vor.u32 %v1577, %v1581
        %v1583 = vor.u32 %v1578, %v1581
        %v1584 = vor.u32 %v1579, %v1581
        %v1585 = vor.u32 %v1580, %v1581
        %v1586 = vsel %vm1278, %v1582, 2147483648
        %v1587 = vand.u32 %v1586, 65535
        %v1588 = vshra.s32 %v1586, 16
        %v1589 = vcvt.s32.f32 %v1587
        %v1590 = vcvt.s32.f32 %v1588
        %1591 = vmax.xlane.f32.xlu0 %v1590
        %v1592 = vpop.xlane.xlu0 %1591
        %vm1593 = vcmp.eq.f32.partialorder %v1590, %v1592
        %v1594 = vsel %vm1593, %v1589, -inf
        %1595 = vmax.xlane.f32.xlu0 %v1594
        %v1596 = vpop.xlane.xlu0 %1595
        %v1597 = vcvt.f32.s32 %v1596
        %v1598 = vcvt.f32.s32 %v1592
        %v1599 = vshll.u32 %v1598, 16
        %v1600 = vadd.s32 %v1599, %v1597
        %v1601 = vsel %vm1278, %v1583, 2147483648
        %v1602 = vand.u32 %v1601, 65535
        %v1603 = vshra.s32 %v1601, 16
        %v1604 = vcvt.s32.f32 %v1602
        %v1605 = vcvt.s32.f32 %v1603
        %1606 = vmax.xlane.f32.xlu0 %v1605
        %v1607 = vpop.xlane.xlu0 %1606
        %vm1608 = vcmp.eq.f32.partialorder %v1605, %v1607
        %v1609 = vsel %vm1608, %v1604, -inf
        %1610 = vmax.xlane.f32.xlu0 %v1609
        %v1611 = vpop.xlane.xlu0 %1610
        %v1612 = vcvt.f32.s32 %v1611
        %v1613 = vcvt.f32.s32 %v1607
        %v1614 = vshll.u32 %v1613, 16
        %v1615 = vadd.s32 %v1614, %v1612
        %v1616 = vsel %vm1278, %v1584, 2147483648
        %v1617 = vand.u32 %v1616, 65535
        %v1618 = vshra.s32 %v1616, 16
        %v1619 = vcvt.s32.f32 %v1617
        %v1620 = vcvt.s32.f32 %v1618
        %1621 = vmax.xlane.f32.xlu0 %v1620
        %v1622 = vpop.xlane.xlu0 %1621
        %vm1623 = vcmp.eq.f32.partialorder %v1620, %v1622
        %v1624 = vsel %vm1623, %v1619, -inf
        %1625 = vmax.xlane.f32.xlu0 %v1624
        %v1626 = vpop.xlane.xlu0 %1625
        %v1627 = vcvt.f32.s32 %v1626
        %v1628 = vcvt.f32.s32 %v1622
        %v1629 = vshll.u32 %v1628, 16
        %v1630 = vadd.s32 %v1629, %v1627
        %v1631 = vsel %vm1278, %v1585, 2147483648
        %v1632 = vand.u32 %v1631, 65535
        %v1633 = vshra.s32 %v1631, 16
        %v1634 = vcvt.s32.f32 %v1632
        %v1635 = vcvt.s32.f32 %v1633
        %1636 = vmax.xlane.f32.xlu0 %v1635
        %v1637 = vpop.xlane.xlu0 %1636
        %vm1638 = vcmp.eq.f32.partialorder %v1635, %v1637
        %v1639 = vsel %vm1638, %v1634, -inf
        %1640 = vmax.xlane.f32.xlu0 %v1639
        %v1641 = vpop.xlane.xlu0 %1640
        %v1642 = vcvt.f32.s32 %v1641
        %v1643 = vcvt.f32.s32 %v1637
        %v1644 = vshll.u32 %v1643, 16
        %v1645 = vadd.s32 %v1644, %v1642
        %v1646 = vand.u32 %v1600, 15
        %v1647 = vand.u32 %v1615, 15
        %v1648 = vand.u32 %v1630, 15
        %v1649 = vand.u32 %v1645, 15
        %v1650 = vsub.s32 15, %v1646
        %v1651 = vsub.s32 15, %v1647
        %v1652 = vsub.s32 15, %v1648
        %v1653 = vsub.s32 15, %v1649
        %vm1654 = vcmp.eq.s32.totalorder %v1582, %v1600
        %vm1655 = vcmp.eq.s32.totalorder %v1583, %v1615
        %vm1656 = vcmp.eq.s32.totalorder %v1584, %v1630
        %vm1657 = vcmp.eq.s32.totalorder %v1585, %v1645
        %v1658 = vsel %vm1654, 2147483648, %v1582
        %v1659 = vsel %vm1655, 2147483648, %v1583
        %v1660 = vsel %vm1656, 2147483648, %v1584
        %v1661 = vsel %vm1657, 2147483648, %v1585
        %v1662 = vsel %vm1278, %v1658, 2147483648
        %v1663 = vand.u32 %v1662, 65535
        %v1664 = vshra.s32 %v1662, 16
        %v1665 = vcvt.s32.f32 %v1663
        %v1666 = vcvt.s32.f32 %v1664
        %1667 = vmax.xlane.f32.xlu0 %v1666
        %v1668 = vpop.xlane.xlu0 %1667
        %vm1669 = vcmp.eq.f32.partialorder %v1666, %v1668
        %v1670 = vsel %vm1669, %v1665, -inf
        %1671 = vmax.xlane.f32.xlu0 %v1670
        %v1672 = vpop.xlane.xlu0 %1671
        %v1673 = vcvt.f32.s32 %v1672
        %v1674 = vcvt.f32.s32 %v1668
        %v1675 = vshll.u32 %v1674, 16
        %v1676 = vadd.s32 %v1675, %v1673
        %v1677 = vsel %vm1278, %v1659, 2147483648
        %v1678 = vand.u32 %v1677, 65535
        %v1679 = vshra.s32 %v1677, 16
        %v1680 = vcvt.s32.f32 %v1678
        %v1681 = vcvt.s32.f32 %v1679
        %1682 = vmax.xlane.f32.xlu0 %v1681
        %v1683 = vpop.xlane.xlu0 %1682
        %vm1684 = vcmp.eq.f32.partialorder %v1681, %v1683
        %v1685 = vsel %vm1684, %v1680, -inf
        %1686 = vmax.xlane.f32.xlu0 %v1685
        %v1687 = vpop.xlane.xlu0 %1686
        %v1688 = vcvt.f32.s32 %v1687
        %v1689 = vcvt.f32.s32 %v1683
        %v1690 = vshll.u32 %v1689, 16
        %v1691 = vadd.s32 %v1690, %v1688
        %v1692 = vsel %vm1278, %v1660, 2147483648
        %v1693 = vand.u32 %v1692, 65535
        %v1694 = vshra.s32 %v1692, 16
        %v1695 = vcvt.s32.f32 %v1693
        %v1696 = vcvt.s32.f32 %v1694
        %1697 = vmax.xlane.f32.xlu0 %v1696
        %v1698 = vpop.xlane.xlu0 %1697
        %vm1699 = vcmp.eq.f32.partialorder %v1696, %v1698
        %v1700 = vsel %vm1699, %v1695, -inf
        %1701 = vmax.xlane.f32.xlu0 %v1700
        %v1702 = vpop.xlane.xlu0 %1701
        %v1703 = vcvt.f32.s32 %v1702
        %v1704 = vcvt.f32.s32 %v1698
        %v1705 = vshll.u32 %v1704, 16
        %v1706 = vadd.s32 %v1705, %v1703
        %v1707 = vsel %vm1278, %v1661, 2147483648
        %v1708 = vand.u32 %v1707, 65535
        %v1709 = vshra.s32 %v1707, 16
        %v1710 = vcvt.s32.f32 %v1708
        %v1711 = vcvt.s32.f32 %v1709
        %1712 = vmax.xlane.f32.xlu0 %v1711
        %v1713 = vpop.xlane.xlu0 %1712
        %vm1714 = vcmp.eq.f32.partialorder %v1711, %v1713
        %v1715 = vsel %vm1714, %v1710, -inf
        %1716 = vmax.xlane.f32.xlu0 %v1715
        %v1717 = vpop.xlane.xlu0 %1716
        %v1718 = vcvt.f32.s32 %v1717
        %v1719 = vcvt.f32.s32 %v1713
        %v1720 = vshll.u32 %v1719, 16
        %v1721 = vadd.s32 %v1720, %v1718
        %v1722 = vand.u32 %v1676, 15
        %v1723 = vand.u32 %v1691, 15
        %v1724 = vand.u32 %v1706, 15
        %v1725 = vand.u32 %v1721, 15
        %v1726 = vsub.s32 15, %v1722
        %v1727 = vsub.s32 15, %v1723
        %v1728 = vsub.s32 15, %v1724
        %v1729 = vsub.s32 15, %v1725
        %vm1730 = vcmp.eq.s32.totalorder %v1658, %v1676
        %vm1731 = vcmp.eq.s32.totalorder %v1659, %v1691
        %vm1732 = vcmp.eq.s32.totalorder %v1660, %v1706
        %vm1733 = vcmp.eq.s32.totalorder %v1661, %v1721
        %v1734 = vsel %vm1730, 2147483648, %v1658
        %v1735 = vsel %vm1731, 2147483648, %v1659
        %v1736 = vsel %vm1732, 2147483648, %v1660
        %v1737 = vsel %vm1733, 2147483648, %v1661
        %v1738 = vsel %vm1278, %v1734, 2147483648
        %v1739 = vand.u32 %v1738, 65535
        %v1740 = vshra.s32 %v1738, 16
        %v1741 = vcvt.s32.f32 %v1739
        %v1742 = vcvt.s32.f32 %v1740
        %1743 = vmax.xlane.f32.xlu0 %v1742
        %v1744 = vpop.xlane.xlu0 %1743
        %vm1745 = vcmp.eq.f32.partialorder %v1742, %v1744
        %v1746 = vsel %vm1745, %v1741, -inf
        %1747 = vmax.xlane.f32.xlu0 %v1746
        %v1748 = vpop.xlane.xlu0 %1747
        %v1749 = vcvt.f32.s32 %v1748
        %v1750 = vcvt.f32.s32 %v1744
        %v1751 = vshll.u32 %v1750, 16
        %v1752 = vadd.s32 %v1751, %v1749
        %v1753 = vsel %vm1278, %v1735, 2147483648
        %v1754 = vand.u32 %v1753, 65535
        %v1755 = vshra.s32 %v1753, 16
        %v1756 = vcvt.s32.f32 %v1754
        %v1757 = vcvt.s32.f32 %v1755
        %1758 = vmax.xlane.f32.xlu0 %v1757
        %v1759 = vpop.xlane.xlu0 %1758
        %vm1760 = vcmp.eq.f32.partialorder %v1757, %v1759
        %v1761 = vsel %vm1760, %v1756, -inf
        %1762 = vmax.xlane.f32.xlu0 %v1761
        %v1763 = vpop.xlane.xlu0 %1762
        %v1764 = vcvt.f32.s32 %v1763
        %v1765 = vcvt.f32.s32 %v1759
        %v1766 = vshll.u32 %v1765, 16
        %v1767 = vadd.s32 %v1766, %v1764
        %v1768 = vsel %vm1278, %v1736, 2147483648
        %v1769 = vand.u32 %v1768, 65535
        %v1770 = vshra.s32 %v1768, 16
        %v1771 = vcvt.s32.f32 %v1769
        %v1772 = vcvt.s32.f32 %v1770
        %1773 = vmax.xlane.f32.xlu0 %v1772
        %v1774 = vpop.xlane.xlu0 %1773
        %vm1775 = vcmp.eq.f32.partialorder %v1772, %v1774
        %v1776 = vsel %vm1775, %v1771, -inf
        %1777 = vmax.xlane.f32.xlu0 %v1776
        %v1778 = vpop.xlane.xlu0 %1777
        %v1779 = vcvt.f32.s32 %v1778
        %v1780 = vcvt.f32.s32 %v1774
        %v1781 = vshll.u32 %v1780, 16
        %v1782 = vadd.s32 %v1781, %v1779
        %v1783 = vsel %vm1278, %v1737, 2147483648
        %v1784 = vand.u32 %v1783, 65535
        %v1785 = vshra.s32 %v1783, 16
        %v1786 = vcvt.s32.f32 %v1784
        %v1787 = vcvt.s32.f32 %v1785
        %1788 = vmax.xlane.f32.xlu0 %v1787
        %v1789 = vpop.xlane.xlu0 %1788
        %vm1790 = vcmp.eq.f32.partialorder %v1787, %v1789
        %v1791 = vsel %vm1790, %v1786, -inf
        %1792 = vmax.xlane.f32.xlu0 %v1791
        %v1793 = vpop.xlane.xlu0 %1792
        %v1794 = vcvt.f32.s32 %v1793
        %v1795 = vcvt.f32.s32 %v1789
        %v1796 = vshll.u32 %v1795, 16
        %v1797 = vadd.s32 %v1796, %v1794
        %v1798 = vand.u32 %v1752, 15
        %v1799 = vand.u32 %v1767, 15
        %v1800 = vand.u32 %v1782, 15
        %v1801 = vand.u32 %v1797, 15
        %v1802 = vsub.s32 15, %v1798
        %v1803 = vsub.s32 15, %v1799
        %v1804 = vsub.s32 15, %v1800
        %v1805 = vsub.s32 15, %v1801
        %vm1806 = vcmp.eq.s32.totalorder %v1734, %v1752
        %vm1807 = vcmp.eq.s32.totalorder %v1735, %v1767
        %vm1808 = vcmp.eq.s32.totalorder %v1736, %v1782
        %vm1809 = vcmp.eq.s32.totalorder %v1737, %v1797
        %v1810 = vsel %vm1806, 2147483648, %v1734
        %v1811 = vsel %vm1807, 2147483648, %v1735
        %v1812 = vsel %vm1808, 2147483648, %v1736
        %v1813 = vsel %vm1809, 2147483648, %v1737
        %v1814 = vsel %vm1278, %v1810, 2147483648
        %v1815 = vand.u32 %v1814, 65535
        %v1816 = vshra.s32 %v1814, 16
        %v1817 = vcvt.s32.f32 %v1815
        %v1818 = vcvt.s32.f32 %v1816
        %1819 = vmax.xlane.f32.xlu0 %v1818
        %v1820 = vpop.xlane.xlu0 %1819
        %vm1821 = vcmp.eq.f32.partialorder %v1818, %v1820
        %v1822 = vsel %vm1821, %v1817, -inf
        %1823 = vmax.xlane.f32.xlu0 %v1822
        %v1824 = vpop.xlane.xlu0 %1823
        %v1825 = vcvt.f32.s32 %v1824
        %v1826 = vcvt.f32.s32 %v1820
        %v1827 = vshll.u32 %v1826, 16
        %v1828 = vadd.s32 %v1827, %v1825
        %v1829 = vsel %vm1278, %v1811, 2147483648
        %v1830 = vand.u32 %v1829, 65535
        %v1831 = vshra.s32 %v1829, 16
        %v1832 = vcvt.s32.f32 %v1830
        %v1833 = vcvt.s32.f32 %v1831
        %1834 = vmax.xlane.f32.xlu0 %v1833
        %v1835 = vpop.xlane.xlu0 %1834
        %vm1836 = vcmp.eq.f32.partialorder %v1833, %v1835
        %v1837 = vsel %vm1836, %v1832, -inf
        %1838 = vmax.xlane.f32.xlu0 %v1837
        %v1839 = vpop.xlane.xlu0 %1838
        %v1840 = vcvt.f32.s32 %v1839
        %v1841 = vcvt.f32.s32 %v1835
        %v1842 = vshll.u32 %v1841, 16
        %v1843 = vadd.s32 %v1842, %v1840
        %v1844 = vsel %vm1278, %v1812, 2147483648
        %v1845 = vand.u32 %v1844, 65535
        %v1846 = vshra.s32 %v1844, 16
        %v1847 = vcvt.s32.f32 %v1845
        %v1848 = vcvt.s32.f32 %v1846
        %1849 = vmax.xlane.f32.xlu0 %v1848
        %v1850 = vpop.xlane.xlu0 %1849
        %vm1851 = vcmp.eq.f32.partialorder %v1848, %v1850
        %v1852 = vsel %vm1851, %v1847, -inf
        %1853 = vmax.xlane.f32.xlu0 %v1852
        %v1854 = vpop.xlane.xlu0 %1853
        %v1855 = vcvt.f32.s32 %v1854
        %v1856 = vcvt.f32.s32 %v1850
        %v1857 = vshll.u32 %v1856, 16
        %v1858 = vadd.s32 %v1857, %v1855
        %v1859 = vsel %vm1278, %v1813, 2147483648
        %v1860 = vand.u32 %v1859, 65535
        %v1861 = vshra.s32 %v1859, 16
        %v1862 = vcvt.s32.f32 %v1860
        %v1863 = vcvt.s32.f32 %v1861
        %1864 = vmax.xlane.f32.xlu0 %v1863
        %v1865 = vpop.xlane.xlu0 %1864
        %vm1866 = vcmp.eq.f32.partialorder %v1863, %v1865
        %v1867 = vsel %vm1866, %v1862, -inf
        %1868 = vmax.xlane.f32.xlu0 %v1867
        %v1869 = vpop.xlane.xlu0 %1868
        %v1870 = vcvt.f32.s32 %v1869
        %v1871 = vcvt.f32.s32 %v1865
        %v1872 = vshll.u32 %v1871, 16
        %v1873 = vadd.s32 %v1872, %v1870
        %v1874 = vand.u32 %v1828, 15
        %v1875 = vand.u32 %v1843, 15
        %v1876 = vand.u32 %v1858, 15
        %v1877 = vand.u32 %v1873, 15
        %v1878 = vsub.s32 15, %v1874
        %v1879 = vsub.s32 15, %v1875
        %v1880 = vsub.s32 15, %v1876
        %v1881 = vsub.s32 15, %v1877
        %vm1882 = vcmp.eq.s32.totalorder %v1810, %v1828
        %vm1883 = vcmp.eq.s32.totalorder %v1811, %v1843
        %vm1884 = vcmp.eq.s32.totalorder %v1812, %v1858
        %vm1885 = vcmp.eq.s32.totalorder %v1813, %v1873
        %v1886 = vsel %vm1882, 2147483648, %v1810
        %v1887 = vsel %vm1883, 2147483648, %v1811
        %v1888 = vsel %vm1884, 2147483648, %v1812
        %v1889 = vsel %vm1885, 2147483648, %v1813
        %v1890 = vsel %vm1278, %v1886, 2147483648
        %v1891 = vand.u32 %v1890, 65535
        %v1892 = vshra.s32 %v1890, 16
        %v1893 = vcvt.s32.f32 %v1891
        %v1894 = vcvt.s32.f32 %v1892
        %1895 = vmax.xlane.f32.xlu0 %v1894
        %v1896 = vpop.xlane.xlu0 %1895
        %vm1897 = vcmp.eq.f32.partialorder %v1894, %v1896
        %v1898 = vsel %vm1897, %v1893, -inf
        %1899 = vmax.xlane.f32.xlu0 %v1898
        %v1900 = vpop.xlane.xlu0 %1899
        %v1901 = vcvt.f32.s32 %v1900
        %v1902 = vcvt.f32.s32 %v1896
        %v1903 = vshll.u32 %v1902, 16
        %v1904 = vadd.s32 %v1903, %v1901
        %v1905 = vsel %vm1278, %v1887, 2147483648
        %v1906 = vand.u32 %v1905, 65535
        %v1907 = vshra.s32 %v1905, 16
        %v1908 = vcvt.s32.f32 %v1906
        %v1909 = vcvt.s32.f32 %v1907
        %1910 = vmax.xlane.f32.xlu0 %v1909
        %v1911 = vpop.xlane.xlu0 %1910
        %vm1912 = vcmp.eq.f32.partialorder %v1909, %v1911
        %v1913 = vsel %vm1912, %v1908, -inf
        %1914 = vmax.xlane.f32.xlu0 %v1913
        %v1915 = vpop.xlane.xlu0 %1914
        %v1916 = vcvt.f32.s32 %v1915
        %v1917 = vcvt.f32.s32 %v1911
        %v1918 = vshll.u32 %v1917, 16
        %v1919 = vadd.s32 %v1918, %v1916
        %v1920 = vsel %vm1278, %v1888, 2147483648
        %v1921 = vand.u32 %v1920, 65535
        %v1922 = vshra.s32 %v1920, 16
        %v1923 = vcvt.s32.f32 %v1921
        %v1924 = vcvt.s32.f32 %v1922
        %1925 = vmax.xlane.f32.xlu0 %v1924
        %v1926 = vpop.xlane.xlu0 %1925
        %vm1927 = vcmp.eq.f32.partialorder %v1924, %v1926
        %v1928 = vsel %vm1927, %v1923, -inf
        %1929 = vmax.xlane.f32.xlu0 %v1928
        %v1930 = vpop.xlane.xlu0 %1929
        %v1931 = vcvt.f32.s32 %v1930
        %v1932 = vcvt.f32.s32 %v1926
        %v1933 = vshll.u32 %v1932, 16
        %v1934 = vadd.s32 %v1933, %v1931
        %v1935 = vsel %vm1278, %v1889, 2147483648
        %v1936 = vand.u32 %v1935, 65535
        %v1937 = vshra.s32 %v1935, 16
        %v1938 = vcvt.s32.f32 %v1936
        %v1939 = vcvt.s32.f32 %v1937
        %1940 = vmax.xlane.f32.xlu0 %v1939
        %v1941 = vpop.xlane.xlu0 %1940
        %vm1942 = vcmp.eq.f32.partialorder %v1939, %v1941
        %v1943 = vsel %vm1942, %v1938, -inf
        %1944 = vmax.xlane.f32.xlu0 %v1943
        %v1945 = vpop.xlane.xlu0 %1944
        %v1946 = vcvt.f32.s32 %v1945
        %v1947 = vcvt.f32.s32 %v1941
        %v1948 = vshll.u32 %v1947, 16
        %v1949 = vadd.s32 %v1948, %v1946
        %v1950 = vand.u32 %v1904, 15
        %v1951 = vand.u32 %v1919, 15
        %v1952 = vand.u32 %v1934, 15
        %v1953 = vand.u32 %v1949, 15
        %v1954 = vsub.s32 15, %v1950
        %v1955 = vsub.s32 15, %v1951
        %v1956 = vsub.s32 15, %v1952
        %v1957 = vsub.s32 15, %v1953
        %vm1958 = vcmp.eq.s32.totalorder %v1886, %v1904
        %vm1959 = vcmp.eq.s32.totalorder %v1887, %v1919
        %vm1960 = vcmp.eq.s32.totalorder %v1888, %v1934
        %vm1961 = vcmp.eq.s32.totalorder %v1889, %v1949
        %v1962 = vsel %vm1958, 2147483648, %v1886
        %v1963 = vsel %vm1959, 2147483648, %v1887
        %v1964 = vsel %vm1960, 2147483648, %v1888
        %v1965 = vsel %vm1961, 2147483648, %v1889
        %v1966 = vsel %vm1278, %v1962, 2147483648
        %v1967 = vand.u32 %v1966, 65535
        %v1968 = vshra.s32 %v1966, 16
        %v1969 = vcvt.s32.f32 %v1967
        %v1970 = vcvt.s32.f32 %v1968
        %1971 = vmax.xlane.f32.xlu0 %v1970
        %v1972 = vpop.xlane.xlu0 %1971
        %vm1973 = vcmp.eq.f32.partialorder %v1970, %v1972
        %v1974 = vsel %vm1973, %v1969, -inf
        %1975 = vmax.xlane.f32.xlu0 %v1974
        %v1976 = vpop.xlane.xlu0 %1975
        %v1977 = vcvt.f32.s32 %v1976
        %v1978 = vcvt.f32.s32 %v1972
        %v1979 = vshll.u32 %v1978, 16
        %v1980 = vadd.s32 %v1979, %v1977
        %v1981 = vsel %vm1278, %v1963, 2147483648
        %v1982 = vand.u32 %v1981, 65535
        %v1983 = vshra.s32 %v1981, 16
        %v1984 = vcvt.s32.f32 %v1982
        %v1985 = vcvt.s32.f32 %v1983
        %1986 = vmax.xlane.f32.xlu0 %v1985
        %v1987 = vpop.xlane.xlu0 %1986
        %vm1988 = vcmp.eq.f32.partialorder %v1985, %v1987
        %v1989 = vsel %vm1988, %v1984, -inf
        %1990 = vmax.xlane.f32.xlu0 %v1989
        %v1991 = vpop.xlane.xlu0 %1990
        %v1992 = vcvt.f32.s32 %v1991
        %v1993 = vcvt.f32.s32 %v1987
        %v1994 = vshll.u32 %v1993, 16
        %v1995 = vadd.s32 %v1994, %v1992
        %v1996 = vsel %vm1278, %v1964, 2147483648
        %v1997 = vand.u32 %v1996, 65535
        %v1998 = vshra.s32 %v1996, 16
        %v1999 = vcvt.s32.f32 %v1997
        %v2000 = vcvt.s32.f32 %v1998
        %2001 = vmax.xlane.f32.xlu0 %v2000
        %v2002 = vpop.xlane.xlu0 %2001
        %vm2003 = vcmp.eq.f32.partialorder %v2000, %v2002
        %v2004 = vsel %vm2003, %v1999, -inf
        %2005 = vmax.xlane.f32.xlu0 %v2004
        %v2006 = vpop.xlane.xlu0 %2005
        %v2007 = vcvt.f32.s32 %v2006
        %v2008 = vcvt.f32.s32 %v2002
        %v2009 = vshll.u32 %v2008, 16
        %v2010 = vadd.s32 %v2009, %v2007
        %v2011 = vsel %vm1278, %v1965, 2147483648
        %v2012 = vand.u32 %v2011, 65535
        %v2013 = vshra.s32 %v2011, 16
        %v2014 = vcvt.s32.f32 %v2012
        %v2015 = vcvt.s32.f32 %v2013
        %2016 = vmax.xlane.f32.xlu0 %v2015
        %v2017 = vpop.xlane.xlu0 %2016
        %vm2018 = vcmp.eq.f32.partialorder %v2015, %v2017
        %v2019 = vsel %vm2018, %v2014, -inf
        %2020 = vmax.xlane.f32.xlu0 %v2019
        %v2021 = vpop.xlane.xlu0 %2020
        %v2022 = vcvt.f32.s32 %v2021
        %v2023 = vcvt.f32.s32 %v2017
        %v2024 = vshll.u32 %v2023, 16
        %v2025 = vadd.s32 %v2024, %v2022
        %v2026 = vand.u32 %v1980, 15
        %v2027 = vand.u32 %v1995, 15
        %v2028 = vand.u32 %v2010, 15
        %v2029 = vand.u32 %v2025, 15
        %v2030 = vsub.s32 15, %v2026
        %v2031 = vsub.s32 15, %v2027
        %v2032 = vsub.s32 15, %v2028
        %v2033 = vsub.s32 15, %v2029
        %vm2034 = vcmp.eq.s32.totalorder %v1962, %v1980
        %vm2035 = vcmp.eq.s32.totalorder %v1963, %v1995
        %vm2036 = vcmp.eq.s32.totalorder %v1964, %v2010
        %vm2037 = vcmp.eq.s32.totalorder %v1965, %v2025
        %v2038 = vsel %vm2034, 2147483648, %v1962
        %v2039 = vsel %vm2035, 2147483648, %v1963
        %v2040 = vsel %vm2036, 2147483648, %v1964
        %v2041 = vsel %vm2037, 2147483648, %v1965
        %v2042 = vsel %vm1278, %v2038, 2147483648
        %v2043 = vand.u32 %v2042, 65535
        %v2044 = vshra.s32 %v2042, 16
        %v2045 = vcvt.s32.f32 %v2043
        %v2046 = vcvt.s32.f32 %v2044
        %2047 = vmax.xlane.f32.xlu0 %v2046
        %v2048 = vpop.xlane.xlu0 %2047
        %vm2049 = vcmp.eq.f32.partialorder %v2046, %v2048
        %v2050 = vsel %vm2049, %v2045, -inf
        %2051 = vmax.xlane.f32.xlu0 %v2050
        %v2052 = vpop.xlane.xlu0 %2051
        %v2053 = vcvt.f32.s32 %v2052
        %v2054 = vcvt.f32.s32 %v2048
        %v2055 = vshll.u32 %v2054, 16
        %v2056 = vadd.s32 %v2055, %v2053
        %v2057 = vsel %vm1278, %v2039, 2147483648
        %v2058 = vand.u32 %v2057, 65535
        %v2059 = vshra.s32 %v2057, 16
        %v2060 = vcvt.s32.f32 %v2058
        %v2061 = vcvt.s32.f32 %v2059
        %2062 = vmax.xlane.f32.xlu0 %v2061
        %v2063 = vpop.xlane.xlu0 %2062
        %vm2064 = vcmp.eq.f32.partialorder %v2061, %v2063
        %v2065 = vsel %vm2064, %v2060, -inf
        %2066 = vmax.xlane.f32.xlu0 %v2065
        %v2067 = vpop.xlane.xlu0 %2066
        %v2068 = vcvt.f32.s32 %v2067
        %v2069 = vcvt.f32.s32 %v2063
        %v2070 = vshll.u32 %v2069, 16
        %v2071 = vadd.s32 %v2070, %v2068
        %v2072 = vsel %vm1278, %v2040, 2147483648
        %v2073 = vand.u32 %v2072, 65535
        %v2074 = vshra.s32 %v2072, 16
        %v2075 = vcvt.s32.f32 %v2073
        %v2076 = vcvt.s32.f32 %v2074
        %2077 = vmax.xlane.f32.xlu0 %v2076
        %v2078 = vpop.xlane.xlu0 %2077
        %vm2079 = vcmp.eq.f32.partialorder %v2076, %v2078
        %v2080 = vsel %vm2079, %v2075, -inf
        %2081 = vmax.xlane.f32.xlu0 %v2080
        %v2082 = vpop.xlane.xlu0 %2081
        %v2083 = vcvt.f32.s32 %v2082
        %v2084 = vcvt.f32.s32 %v2078
        %v2085 = vshll.u32 %v2084, 16
        %v2086 = vadd.s32 %v2085, %v2083
        %v2087 = vsel %vm1278, %v2041, 2147483648
        %v2088 = vand.u32 %v2087, 65535
        %v2089 = vshra.s32 %v2087, 16
        %v2090 = vcvt.s32.f32 %v2088
        %v2091 = vcvt.s32.f32 %v2089
        %2092 = vmax.xlane.f32.xlu0 %v2091
        %v2093 = vpop.xlane.xlu0 %2092
        %vm2094 = vcmp.eq.f32.partialorder %v2091, %v2093
        %v2095 = vsel %vm2094, %v2090, -inf
        %2096 = vmax.xlane.f32.xlu0 %v2095
        %v2097 = vpop.xlane.xlu0 %2096
        %v2098 = vcvt.f32.s32 %v2097
        %v2099 = vcvt.f32.s32 %v2093
        %v2100 = vshll.u32 %v2099, 16
        %v2101 = vadd.s32 %v2100, %v2098
        %v2102 = vand.u32 %v2056, 15
        %v2103 = vand.u32 %v2071, 15
        %v2104 = vand.u32 %v2086, 15
        %v2105 = vand.u32 %v2101, 15
        %v2106 = vsub.s32 15, %v2102
        %v2107 = vsub.s32 15, %v2103
        %v2108 = vsub.s32 15, %v2104
        %v2109 = vsub.s32 15, %v2105
        %vm2110 = vcmp.eq.s32.totalorder %v2038, %v2056
        %vm2111 = vcmp.eq.s32.totalorder %v2039, %v2071
        %vm2112 = vcmp.eq.s32.totalorder %v2040, %v2086
        %vm2113 = vcmp.eq.s32.totalorder %v2041, %v2101
        %v2114 = vsel %vm2110, 2147483648, %v2038
        %v2115 = vsel %vm2111, 2147483648, %v2039
        %v2116 = vsel %vm2112, 2147483648, %v2040
        %v2117 = vsel %vm2113, 2147483648, %v2041
        %v2118 = vsel %vm1278, %v2114, 2147483648
        %v2119 = vand.u32 %v2118, 65535
        %v2120 = vshra.s32 %v2118, 16
        %v2121 = vcvt.s32.f32 %v2119
        %v2122 = vcvt.s32.f32 %v2120
        %2123 = vmax.xlane.f32.xlu0 %v2122
        %v2124 = vpop.xlane.xlu0 %2123
        %vm2125 = vcmp.eq.f32.partialorder %v2122, %v2124
        %v2126 = vsel %vm2125, %v2121, -inf
        %2127 = vmax.xlane.f32.xlu0 %v2126
        %v2128 = vpop.xlane.xlu0 %2127
        %v2129 = vcvt.f32.s32 %v2128
        %v2130 = vcvt.f32.s32 %v2124
        %v2131 = vshll.u32 %v2130, 16
        %v2132 = vadd.s32 %v2131, %v2129
        %v2133 = vsel %vm1278, %v2115, 2147483648
        %v2134 = vand.u32 %v2133, 65535
        %v2135 = vshra.s32 %v2133, 16
        %v2136 = vcvt.s32.f32 %v2134
        %v2137 = vcvt.s32.f32 %v2135
        %2138 = vmax.xlane.f32.xlu0 %v2137
        %v2139 = vpop.xlane.xlu0 %2138
        %vm2140 = vcmp.eq.f32.partialorder %v2137, %v2139
        %v2141 = vsel %vm2140, %v2136, -inf
        %2142 = vmax.xlane.f32.xlu0 %v2141
        %v2143 = vpop.xlane.xlu0 %2142
        %v2144 = vcvt.f32.s32 %v2143
        %v2145 = vcvt.f32.s32 %v2139
        %v2146 = vshll.u32 %v2145, 16
        %v2147 = vadd.s32 %v2146, %v2144
        %v2148 = vsel %vm1278, %v2116, 2147483648
        %v2149 = vand.u32 %v2148, 65535
        %v2150 = vshra.s32 %v2148, 16
        %v2151 = vcvt.s32.f32 %v2149
        %v2152 = vcvt.s32.f32 %v2150
        %2153 = vmax.xlane.f32.xlu0 %v2152
        %v2154 = vpop.xlane.xlu0 %2153
        %vm2155 = vcmp.eq.f32.partialorder %v2152, %v2154
        %v2156 = vsel %vm2155, %v2151, -inf
        %2157 = vmax.xlane.f32.xlu0 %v2156
        %v2158 = vpop.xlane.xlu0 %2157
        %v2159 = vcvt.f32.s32 %v2158
        %v2160 = vcvt.f32.s32 %v2154
        %v2161 = vshll.u32 %v2160, 16
        %v2162 = vadd.s32 %v2161, %v2159
        %v2163 = vsel %vm1278, %v2117, 2147483648
        %v2164 = vand.u32 %v2163, 65535
        %v2165 = vshra.s32 %v2163, 16
        %v2166 = vcvt.s32.f32 %v2164
        %v2167 = vcvt.s32.f32 %v2165
        %2168 = vmax.xlane.f32.xlu0 %v2167
        %v2169 = vpop.xlane.xlu0 %2168
        %vm2170 = vcmp.eq.f32.partialorder %v2167, %v2169
        %v2171 = vsel %vm2170, %v2166, -inf
        %2172 = vmax.xlane.f32.xlu0 %v2171
        %v2173 = vpop.xlane.xlu0 %2172
        %v2174 = vcvt.f32.s32 %v2173
        %v2175 = vcvt.f32.s32 %v2169
        %v2176 = vshll.u32 %v2175, 16
        %v2177 = vadd.s32 %v2176, %v2174
        %v2178 = vand.u32 %v2132, 15
        %v2179 = vand.u32 %v2147, 15
        %v2180 = vand.u32 %v2162, 15
        %v2181 = vand.u32 %v2177, 15
        %v2182 = vsub.s32 15, %v2178
        %v2183 = vsub.s32 15, %v2179
        %v2184 = vsub.s32 15, %v2180
        %v2185 = vsub.s32 15, %v2181
        %vm2186 = vcmp.eq.s32.totalorder %v2114, %v2132
        %vm2187 = vcmp.eq.s32.totalorder %v2115, %v2147
        %vm2188 = vcmp.eq.s32.totalorder %v2116, %v2162
        %vm2189 = vcmp.eq.s32.totalorder %v2117, %v2177
        %v2190 = vsel %vm2186, 2147483648, %v2114
        %v2191 = vsel %vm2187, 2147483648, %v2115
        %v2192 = vsel %vm2188, 2147483648, %v2116
        %v2193 = vsel %vm2189, 2147483648, %v2117
        %v2194 = vsel %vm1278, %v2190, 2147483648
        %v2195 = vand.u32 %v2194, 65535
        %v2196 = vshra.s32 %v2194, 16
        %v2197 = vcvt.s32.f32 %v2195
        %v2198 = vcvt.s32.f32 %v2196
        %2199 = vmax.xlane.f32.xlu0 %v2198
        %v2200 = vpop.xlane.xlu0 %2199
        %vm2201 = vcmp.eq.f32.partialorder %v2198, %v2200
        %v2202 = vsel %vm2201, %v2197, -inf
        %2203 = vmax.xlane.f32.xlu0 %v2202
        %v2204 = vpop.xlane.xlu0 %2203
        %v2205 = vcvt.f32.s32 %v2204
        %v2206 = vcvt.f32.s32 %v2200
        %v2207 = vshll.u32 %v2206, 16
        %v2208 = vadd.s32 %v2207, %v2205
        %v2209 = vsel %vm1278, %v2191, 2147483648
        %v2210 = vand.u32 %v2209, 65535
        %v2211 = vshra.s32 %v2209, 16
        %v2212 = vcvt.s32.f32 %v2210
        %v2213 = vcvt.s32.f32 %v2211
        %2214 = vmax.xlane.f32.xlu0 %v2213
        %v2215 = vpop.xlane.xlu0 %2214
        %vm2216 = vcmp.eq.f32.partialorder %v2213, %v2215
        %v2217 = vsel %vm2216, %v2212, -inf
        %2218 = vmax.xlane.f32.xlu0 %v2217
        %v2219 = vpop.xlane.xlu0 %2218
        %v2220 = vcvt.f32.s32 %v2219
        %v2221 = vcvt.f32.s32 %v2215
        %v2222 = vshll.u32 %v2221, 16
        %v2223 = vadd.s32 %v2222, %v2220
        %v2224 = vsel %vm1278, %v2192, 2147483648
        %v2225 = vand.u32 %v2224, 65535
        %v2226 = vshra.s32 %v2224, 16
        %v2227 = vcvt.s32.f32 %v2225
        %v2228 = vcvt.s32.f32 %v2226
        %2229 = vmax.xlane.f32.xlu0 %v2228
        %v2230 = vpop.xlane.xlu0 %2229
        %vm2231 = vcmp.eq.f32.partialorder %v2228, %v2230
        %v2232 = vsel %vm2231, %v2227, -inf
        %2233 = vmax.xlane.f32.xlu0 %v2232
        %v2234 = vpop.xlane.xlu0 %2233
        %v2235 = vcvt.f32.s32 %v2234
        %v2236 = vcvt.f32.s32 %v2230
        %v2237 = vshll.u32 %v2236, 16
        %v2238 = vadd.s32 %v2237, %v2235
        %v2239 = vsel %vm1278, %v2193, 2147483648
        %v2240 = vand.u32 %v2239, 65535
        %v2241 = vshra.s32 %v2239, 16
        %v2242 = vcvt.s32.f32 %v2240
        %v2243 = vcvt.s32.f32 %v2241
        %2244 = vmax.xlane.f32.xlu0 %v2243
        %v2245 = vpop.xlane.xlu0 %2244
        %vm2246 = vcmp.eq.f32.partialorder %v2243, %v2245
        %v2247 = vsel %vm2246, %v2242, -inf
        %2248 = vmax.xlane.f32.xlu0 %v2247
        %v2249 = vpop.xlane.xlu0 %2248
        %v2250 = vcvt.f32.s32 %v2249
        %v2251 = vcvt.f32.s32 %v2245
        %v2252 = vshll.u32 %v2251, 16
        %v2253 = vadd.s32 %v2252, %v2250
        %v2254 = vand.u32 %v2208, 15
        %v2255 = vand.u32 %v2223, 15
        %v2256 = vand.u32 %v2238, 15
        %v2257 = vand.u32 %v2253, 15
        %v2258 = vsub.s32 15, %v2254
        %v2259 = vsub.s32 15, %v2255
        %v2260 = vsub.s32 15, %v2256
        %v2261 = vsub.s32 15, %v2257
        %vm2262 = vcmask 7168
        %v2263 = vsel %vm2262, %v1650, %v1726
        %v2264 = vsel %vm2262, %v1651, %v1727
        %v2265 = vsel %vm2262, %v1652, %v1728
        %v2266 = vsel %vm2262, %v1653, %v1729
        %vm2267 = vcmask 15360
        %v2268 = vsel %vm2267, %v2263, %v1802
        %v2269 = vsel %vm2267, %v2264, %v1803
        %v2270 = vsel %vm2267, %v2265, %v1804
        %v2271 = vsel %vm2267, %v2266, %v1805
        %vm2272 = vcmask 23552
        %v2273 = vsel %vm2272, %v2268, %v1878
        %v2274 = vsel %vm2272, %v2269, %v1879
        %v2275 = vsel %vm2272, %v2270, %v1880
        %v2276 = vsel %vm2272, %v2271, %v1881
        %vm2277 = vcmask 31744
        %v2278 = vsel %vm2277, %v2273, %v1954
        %v2279 = vsel %vm2277, %v2274, %v1955
        %v2280 = vsel %vm2277, %v2275, %v1956
        %v2281 = vsel %vm2277, %v2276, %v1957
        %vm2282 = vcmask 39936
        %v2283 = vsel %vm2282, %v2278, %v2030
        %v2284 = vsel %vm2282, %v2279, %v2031
        %v2285 = vsel %vm2282, %v2280, %v2032
        %v2286 = vsel %vm2282, %v2281, %v2033
        %vm2287 = vcmask 48128
        %v2288 = vsel %vm2287, %v2283, %v2106
        %v2289 = vsel %vm2287, %v2284, %v2107
        %v2290 = vsel %vm2287, %v2285, %v2108
        %v2291 = vsel %vm2287, %v2286, %v2109
        %vm2292 = vcmask 56320
        %v2293 = vsel %vm2292, %v2288, %v2182
        %v2294 = vsel %vm2292, %v2289, %v2183
        %v2295 = vsel %vm2292, %v2290, %v2184
        %v2296 = vsel %vm2292, %v2291, %v2185
        %vm2297 = vcmask 64512
        %v2298 = vsel %vm2297, %v2293, %v2258
        %v2299 = vsel %vm2297, %v2294, %v2259
        %v2300 = vsel %vm2297, %v2295, %v2260
        %v2301 = vsel %vm2297, %v2296, %v2261
        %vm2302 = vcmask 72704
        %2303 = vst.msk [vmem:[%s380] sm:$0xff] %vm2302, %v2298
        %2304 = vst.msk [vmem:[%s380 + $0x8] sm:$0xff] %vm2302, %v2299
        %2305 = vst.msk [vmem:[%s380 + $0x10] sm:$0xff] %vm2302, %v2300
        %2306 = vst.msk [vmem:[%s380 + $0x18] sm:$0xff] %vm2302, %v2301
        %s2307 = sand.u32 %s167, 1
        %s2308 = scalar_lea.sflag [#allocation3], %s2307
        %s2309 = sand.u32 %s167, 1
        %s2310 = smul.addr %s2309, 32
        %s2311 = scalar_lea.vmem [#allocation2], %s2310
        %s2312 = smul.u32 2, %s25
        %s2313 = smul.u32 2, %s26
        %p2314 = scmp.lt.s32.totalorder %s2312, 3
        %s2315 = scalar_select %p2314, %s2312, 3
        %p2316 = scmp.lt.s32.totalorder %s2313, 1
        %s2317 = scalar_select %p2316, %s2313, 1
        %s2318 = smul.addr %s2315, 2
        %s2319 = sadd.s32 %s2317, %s2318
        %s2320 = smul.addr %s2319, 8
        %s2321 = scalar_lea.vmem %s6, %s2320
        // Predicated region
        $region41: #{dense_dilated_knn_graph.1} parent=39 // pred_check
          %p2322 = pneg %p177
        $region42: #{dense_dilated_knn_graph.1} parent=39 // pred_check_branch
          %2324 = sbr.rel (%p2322) target = $region44
        $region43: #{dense_dilated_knn_graph.1} parent=39 // pred_region
          %s2325 = smul.u32 2, %s25
          %s2326 = smul.u32 2, %s26
          %2328 = vsyncadd %s2308, 0
          %s2329 = smul.addr %s2325, 2
          %s2330 = sadd.s32 %s2326, %s2329
          %s2331 = smul.addr %s2330, 8
          %s2332 = scalar_lea.hbm %s5, %s2331
          %s2333 = sshll.u32 %s2311, 4
          %s2334 = int_to_ptr.vmem [resolvable:$true] %s2333
          %s2335 = sshll.u32 %s2332, 4
          %s2336 = int_to_ptr.hbm [resolvable:$true] %s2335
          %2341 = dma.vmem_to_hbm [thread:$0]  %s2334, 512, %s2336, %s2308, 128, 128, 8
        $region44: #{dense_dilated_knn_graph.1} parent=39 // pred_fallthru
          _
        // Predicated region
        $region45: #{dense_dilated_knn_graph.1} parent=39 // pred_check
          %p2342 = pneg %p205
        $region46: #{dense_dilated_knn_graph.1} parent=39 // pred_check_branch
          %2344 = sbr.rel (%p2342) target = $region48
        $region47: #{dense_dilated_knn_graph.1} parent=39 // pred_region
          %s2345 = smul.u32 2, %s25
          %s2346 = smul.u32 2, %s26
        $region48: #{dense_dilated_knn_graph.1} parent=39 // pred_fallthru
          _
      $region40: #{dense_dilated_knn_graph.1} parent=5 // pred_fallthru
        _
      %p2347 = scmp.le.s32.totalorder 2, %s16
      // Predicated region
      $region49: #{dense_dilated_knn_graph.1} parent=5 // pred_check
        %p2348 = pneg %p2347
      $region50: #{dense_dilated_knn_graph.1} parent=5 // pred_check_branch
        %2350 = sbr.rel (%p2348) target = $region52
      $region51: #{dense_dilated_knn_graph.1} parent=5 // pred_region
        %s2351 = ssub.s32 %s16, 2
        // Predicated region
        $region53: #{dense_dilated_knn_graph.1} parent=51 // pred_check
          %p2352 = pneg %p183
        $region54: #{dense_dilated_knn_graph.1} parent=51 // pred_check_branch
          %2354 = sbr.rel (%p2352) target = $region56
        $region55: #{dense_dilated_knn_graph.1} parent=51 // pred_region
          %s2355 = sand.u32 %s168, 1
          %s2356 = scalar_lea.sflag [#allocation3], %s2355
          %s2357 = sand.u32 %s168, 1
          %s2358 = smul.addr %s2357, 32
          %s2359 = scalar_lea.vmem [#allocation2], %s2358
          %2361 = dma.done %s2356, 512
        $region56: #{dense_dilated_knn_graph.1} parent=51 // pred_fallthru
          _
        // Predicated region
        $region57: #{dense_dilated_knn_graph.1} parent=51 // pred_check
          %p2362 = pneg %p211
        $region58: #{dense_dilated_knn_graph.1} parent=51 // pred_check_branch
          %2364 = sbr.rel (%p2362) target = $region60
        $region59: #{dense_dilated_knn_graph.1} parent=51 // pred_region
          %s2365 = smul.u32 2, %s27
          %s2366 = smul.u32 2, %s28
          %p2367 = scmp.lt.s32.totalorder %s2365, 3
          %s2368 = scalar_select %p2367, %s2365, 3
          %p2369 = scmp.lt.s32.totalorder %s2366, 1
          %s2370 = scalar_select %p2369, %s2366, 1
          %s2371 = smul.addr %s2368, 2
          %s2372 = sadd.s32 %s2370, %s2371
          %s2373 = smul.addr %s2372, 8
          %s2374 = scalar_lea.vmem %s6, %s2373
        $region60: #{dense_dilated_knn_graph.1} parent=51 // pred_fallthru
          _
      $region52: #{dense_dilated_knn_graph.1} parent=5 // pred_fallthru
        _
    $region6: #{dense_dilated_knn_graph.1} parent=1 // loop_footer
      %s20 = sadd.s32 1, %s16
    $region7: #{dense_dilated_knn_graph.1} parent=1 // loop_footer_branch
      %15 = sbr.rel target = $region3
    $region8: #{dense_dilated_knn_graph.1} parent=1 // loop_exit
      _
    %2375 = vsyncpa [#allocation3], 1
    %s2376 = scalar_lea.sflag [#allocation3], 1
    %2377 = vsyncpa %s2376, 1

</llo_original>
